<compile_context>
chip_gen: v5e
topology: v5e:2x2
jax: 0.10.0
libtpu: 0.0.40
codegen_flags: <defaults>
</compile_context>

<pallas_src>
import functools

import jax
import jax.numpy as jnp
from jax.experimental import pallas as pl
from jax.experimental.pallas import tpu as pltpu

LMARK_NUM = 51


# ---------------------------------------------------------------------------
# Pallas kernels
# ---------------------------------------------------------------------------
def _conv_matmul_kernel(x_ref, w_ref, b_ref, o_ref):
    """One conv layer for one branch: relu(im2col_patches @ W + b)."""
    y = jnp.dot(x_ref[...].astype(jnp.bfloat16), w_ref[...],
                preferred_element_type=jnp.float32)
    o_ref[...] = jnp.maximum(y + b_ref[...], 0.0)


def _head_kernel(lmark_ref, feat_ref,
                 lw1_ref, lb1_ref, lw2_ref, lb2_ref,
                 cw1_ref, cb1_ref, cw2_ref, cb2_ref,
                 z_ref, y_ref):
    """Fused: lmark MLP -> concat(z) -> Linear(208,208)+ReLU -> Linear(208,1)+Sigmoid."""
    # lmark encoder: (B,153) -> (B,64) -> (B,16)
    h = jnp.dot(lmark_ref[...].astype(jnp.bfloat16), lw1_ref[...],
                preferred_element_type=jnp.float32)
    h = jnp.maximum(h + lb1_ref[...], 0.0)
    x1 = jnp.dot(h.astype(jnp.bfloat16), lw2_ref[...],
                 preferred_element_type=jnp.float32)
    x1 = jnp.maximum(x1 + lb2_ref[...], 0.0)

    # z = [x1 | conv features]  (B, 208), emitted directly (no XLA concat)
    z = jnp.concatenate([x1, feat_ref[...]], axis=1)
    z_ref[...] = z

    # classifier
    g = jnp.dot(z.astype(jnp.bfloat16), cw1_ref[...],
                preferred_element_type=jnp.float32)
    g = jnp.maximum(g + cb1_ref[...], 0.0)
    # Linear(208, 1) as a VPU multiply + lane reduction (avoid N=1 MXU matmul)
    logit = jnp.sum(g * cw2_ref[...], axis=1, keepdims=True) + cb2_ref[...]
    y_ref[...] = jax.nn.sigmoid(logit)


# ---------------------------------------------------------------------------
# Conv layer: NHWC im2col (XLA glue) + one pallas_call over the 3 branches
# ---------------------------------------------------------------------------
def _im2col_nhwc(x, k=3, stride=2, pad=1):
    # x: (N, H, W, C) NHWC
    N, H, W, C = x.shape
    Ho = (H + 2 * pad - k) // stride + 1
    Wo = (W + 2 * pad - k) // stride + 1
    xp = jnp.pad(x, ((0, 0), (pad, pad), (pad, pad), (0, 0)))
    cols = []
    for di in range(k):
        for dj in range(k):
            cols.append(xp[:, di:di + stride * Ho:stride,
                           dj:dj + stride * Wo:stride, :])     # (N,Ho,Wo,C)
    patches = jnp.stack(cols, axis=3)                           # (N,Ho,Wo,9,C)
    patches = patches.reshape(N * Ho * Wo, k * k * C)           # cols: (kh,kw,c)
    return patches, Ho, Wo


def _conv_layer_3branch(x_nhwc, w_stack, b_stack):
    """x_nhwc: (3B, H, W, C).  w_stack: (3, 9C, OC) bf16.  b_stack: (3, 1, OC) f32."""
    patches, Ho, Wo = _im2col_nhwc(x_nhwc)
    M, K = patches.shape
    OC = w_stack.shape[2]
    Mb = M // 3                                     # rows per branch (mult of 8)
    y = pl.pallas_call(
        _conv_matmul_kernel,
        out_shape=jax.ShapeDtypeStruct((M, OC), jnp.float32),
        grid=(3,),
        in_specs=[
            pl.BlockSpec((Mb, K), lambda j: (j, 0)),
            pl.BlockSpec((None, K, OC), lambda j: (j, 0, 0)),   # per-branch weight
            pl.BlockSpec((None, 1, OC), lambda j: (j, 0, 0)),   # per-branch bias
        ],
        out_specs=pl.BlockSpec((Mb, OC), lambda j: (j, 0)),
        compiler_params=pltpu.CompilerParams(
            dimension_semantics=("parallel",)),     # 2nd TensorCore on v7x
    )(patches, w_stack, b_stack)
    return y.reshape(x_nhwc.shape[0], Ho, Wo, OC)   # stay NHWC for next layer


def _head(lmark, feats, p):
    B = lmark.shape[0]
    ins = (lmark, feats,
           p["lmark_w1"], p["lmark_b1"], p["lmark_w2"], p["lmark_b2"],
           p["cls_w1"], p["cls_b1"], p["cls_w2"], p["cls_b2"])
    z, y = pl.pallas_call(
        _head_kernel,
        out_shape=(jax.ShapeDtypeStruct((B, 208), jnp.float32),
                   jax.ShapeDtypeStruct((B, 1), jnp.float32)),
        in_specs=[pl.BlockSpec(a.shape, lambda: (0, 0)) for a in ins],
        out_specs=(pl.BlockSpec((B, 208), lambda: (0, 0)),
                   pl.BlockSpec((B, 1), lambda: (0, 0))),
    )(*ins)
    return y, z


# ---------------------------------------------------------------------------
# Parameter init (PyTorch-default-style) + kernel-ready packing
# ---------------------------------------------------------------------------
def _init_linear(key, in_f, out_f):
    k1, k2 = jax.random.split(key)
    bound = 1.0 / float(in_f) ** 0.5
    w = jax.random.uniform(k1, (in_f, out_f), jnp.float32, -bound, bound)
    b = jax.random.uniform(k2, (out_f,), jnp.float32, -bound, bound)
    return w, b


def _init_conv(key, in_c, out_c, k=3):
    k1, k2 = jax.random.split(key)
    bound = 1.0 / float(in_c * k * k) ** 0.5
    w = jax.random.uniform(k1, (out_c, in_c, k, k), jnp.float32, -bound, bound)
    b = jax.random.uniform(k2, (out_c,), jnp.float32, -bound, bound)
    return w, b


def init_encoder_params(key):
    keys = jax.random.split(key, 13)
    p = {}
    p["lmark1"] = _init_linear(keys[0], LMARK_NUM * 3, 64)
    p["lmark2"] = _init_linear(keys[1], 64, 16)
    for i, name in enumerate(["reye", "leye", "mouth"]):
        p[f"{name}1"] = _init_conv(keys[2 + 3 * i], 3, 32)
        p[f"{name}2"] = _init_conv(keys[3 + 3 * i], 32, 16)
        p[f"{name}3"] = _init_conv(keys[4 + 3 * i], 16, 8)
    p["cls1"] = _init_linear(keys[11], 208, 208)
    p["cls2"] = _init_linear(keys[12], 208, 1)
    return p


def pack_params(p):
    """One-time layout prep: stack per-branch conv weights as (3, 9*IC, OC)
    with rows ordered (kh, kw, ic) to match NHWC im2col columns; store matmul
    weights in bf16 (MXU-native), biases in f32."""
    def conv_w(w):  # (OC, IC, 3, 3) -> (9*IC, OC), row order (kh, kw, ic)
        oc, ic, k, _ = w.shape
        return w.transpose(2, 3, 1, 0).reshape(k * k * ic, oc)

    packed = {}
    for layer in (1, 2, 3):
        ws = jnp.stack([conv_w(p[f"{n}{layer}"][0]) for n in ("reye", "leye", "mouth")])
        bs = jnp.stack([p[f"{n}{layer}"][1][None, :] for n in ("reye", "leye", "mouth")])
        packed[f"conv{layer}_w"] = ws.astype(jnp.bfloat16)
        packed[f"conv{layer}_b"] = bs.astype(jnp.float32)
    packed["lmark_w1"] = p["lmark1"][0].astype(jnp.bfloat16)
    packed["lmark_b1"] = p["lmark1"][1][None, :]
    packed["lmark_w2"] = p["lmark2"][0].astype(jnp.bfloat16)
    packed["lmark_b2"] = p["lmark2"][1][None, :]
    packed["cls_w1"] = p["cls1"][0].astype(jnp.bfloat16)
    packed["cls_b1"] = p["cls1"][1][None, :]
    packed["cls_w2"] = p["cls2"][0].T              # (1, 208) f32 for VPU reduce
    packed["cls_b2"] = p["cls2"][1][None, :]        # (1, 1)
    return packed


# ---------------------------------------------------------------------------
# Encoder forward (4 pallas_calls total)
# ---------------------------------------------------------------------------
@jax.jit
def encoder_forward(packed, lmark, reye, leye, mouth):
    B = lmark.shape[0]
    # batch the three conv encoders: (3B, 3, 16, 32) NCHW -> NHWC once
    x = jnp.concatenate([reye, leye, mouth], axis=0).transpose(0, 2, 3, 1)
    x = _conv_layer_3branch(x, packed["conv1_w"], packed["conv1_b"])
    x = _conv_layer_3branch(x, packed["conv2_w"], packed["conv2_b"])
    x = _conv_layer_3branch(x, packed["conv3_w"], packed["conv3_b"])
    # (3B, 2, 4, 8) NHWC -> torch .view(-1, 64) order (c, h, w) per sample,
    # branches laid out as [reye | leye | mouth] -> (B, 192).  Tiny tensor.
    Ho, Wo, C = x.shape[1], x.shape[2], x.shape[3]
    feats = (x.reshape(3, B, Ho, Wo, C)
               .transpose(1, 0, 4, 2, 3)
               .reshape(B, 3 * C * Ho * Wo))
    y, z = _head(lmark, feats, packed)
    return y, z


# ---------------------------------------------------------------------------
# Pure-JAX reference (mirrors the bf16-input / f32-accumulate matmul math)
# ---------------------------------------------------------------------------
def _linear_ref(x, w, b, act="none"):
    y = jnp.dot(x.astype(jnp.bfloat16), w.astype(jnp.bfloat16),
                preferred_element_type=jnp.float32) + b
    if act == "relu":
        y = jax.nn.relu(y)
    return y


def _conv_ref(x, w, b):
    y = jax.lax.conv_general_dilated(
        x.astype(jnp.bfloat16), w.astype(jnp.bfloat16),
        window_strides=(2, 2), padding=((1, 1), (1, 1)),
        dimension_numbers=("NCHW", "OIHW", "NCHW"),
        preferred_element_type=jnp.float32)
    return jax.nn.relu(y + b[None, :, None, None])


def encoder_ref(params, lmark, reye, leye, mouth):
    x1 = _linear_ref(lmark, *params["lmark1"], act="relu")
    x1 = _linear_ref(x1, *params["lmark2"], act="relu")

    def conv_enc(x, name):
        x = _conv_ref(x, *params[f"{name}1"])
        x = _conv_ref(x, *params[f"{name}2"])
        x = _conv_ref(x, *params[f"{name}3"])
        return x.reshape(x.shape[0], -1)            # NCHW flatten (c, h, w)

    x2, x3, x4 = conv_enc(reye, "reye"), conv_enc(leye, "leye"), conv_enc(mouth, "mouth")
    z = jnp.concatenate([x1, x2, x3, x4], axis=1)
    h = _linear_ref(z, *params["cls1"], act="relu")
    y = jax.nn.sigmoid(h @ params["cls2"][0] + params["cls2"][1])   # f32 like kernel
    return y, z


if __name__ == "__main__":
    key = jax.random.PRNGKey(0)
    kp, k1, k2, k3, k4 = jax.random.split(key, 5)
    params = init_encoder_params(kp)
    packed = pack_params(params)

    B = 2
    lmark = jax.random.normal(k1, (B, LMARK_NUM * 3), jnp.float32)
    reye = jax.random.normal(k2, (B, 3, 16, 32), jnp.float32)
    leye = jax.random.normal(k3, (B, 3, 16, 32), jnp.float32)
    mouth = jax.random.normal(k4, (B, 3, 16, 32), jnp.float32)

    y, z = encoder_forward(packed, lmark, reye, leye, mouth)
    jax.block_until_ready((y, z))
    assert y.shape == (B, 1) and z.shape == (B, 208)

    y_ref, z_ref = encoder_ref(params, lmark, reye, leye, mouth)
    assert jnp.allclose(z, z_ref, atol=5e-3, rtol=5e-3), float(jnp.max(jnp.abs(z - z_ref)))
    assert jnp.allclose(y, y_ref, atol=5e-3, rtol=5e-3), float(jnp.max(jnp.abs(y - y_ref)))

    print("KERNEL_OK")
</pallas_src>

<mosaic_0001>
module attributes {stable_mosaic.version = 11 : i64} {
  func.func @_conv_matmul_kernel(%arg0: i32, %arg1: memref<256x27xf32, #tpu.memory_space<vmem>>, %arg2: memref<1x27x32xbf16, #tpu.memory_space<vmem>>, %arg3: memref<1x1x32xf32, #tpu.memory_space<vmem>>, %arg4: memref<256x32xf32, #tpu.memory_space<vmem>>) attributes {dimension_semantics = [#tpu.dimension_semantics<parallel>], iteration_bounds = array<i64: 3>, scalar_prefetch = 0 : i64, scratch_operands = 0 : i64, tpu.core_type = #tpu.core_type<tc>, window_params = [{transform_indices = @transform_0, window_bounds = array<i64: 256, 27>}, {transform_indices = @transform_1, window_bounds = array<i64: 1, 27, 32>}, {transform_indices = @transform_2, window_bounds = array<i64: 1, 1, 32>}, {transform_indices = @transform_3, window_bounds = array<i64: 256, 32>}]} {
    %c0 = arith.constant 0 : index
    %c0_0 = arith.constant 0 : index
    %0 = vector.load %arg1[%c0, %c0_0] : memref<256x27xf32, #tpu.memory_space<vmem>>, vector<256x27xf32>
    %1 = arith.truncf %0 : vector<256x27xf32> to vector<256x27xbf16>
    %c0_1 = arith.constant 0 : index
    %c0_2 = arith.constant 0 : index
    %c0_3 = arith.constant 0 : index
    %2 = vector.load %arg2[%c0_1, %c0_2, %c0_3] : memref<1x27x32xbf16, #tpu.memory_space<vmem>>, vector<1x27x32xbf16>
    %3 = vector.shape_cast %2 : vector<1x27x32xbf16> to vector<27x32xbf16>
    %cst = arith.constant dense<0.000000e+00> : vector<256x32xf32>
    %4 = tpu.matmul %1, %3, %cst {dimension_numbers = #tpu.dot_dimension_numbers<[1], [0], [0], [1], [0, 0, 1, 1], [], []>} : vector<256x27xbf16>, vector<27x32xbf16>, vector<256x32xf32> -> vector<256x32xf32>
    %c0_4 = arith.constant 0 : index
    %c0_5 = arith.constant 0 : index
    %c0_6 = arith.constant 0 : index
    %5 = vector.load %arg3[%c0_4, %c0_5, %c0_6] : memref<1x1x32xf32, #tpu.memory_space<vmem>>, vector<1x1x32xf32>
    %6 = vector.shape_cast %5 : vector<1x1x32xf32> to vector<1x32xf32>
    %7 = vector.broadcast %6 : vector<1x32xf32> to vector<256x32xf32>
    %8 = arith.addf %4, %7 : vector<256x32xf32>
    %cst_7 = arith.constant 0.000000e+00 : f32
    %9 = vector.broadcast %cst_7 : f32 to vector<256x32xf32>
    %10 = arith.maximumf %8, %9 : vector<256x32xf32>
    %c0_8 = arith.constant 0 : index
    %c0_9 = arith.constant 0 : index
    %11 = vector.load %arg4[%c0_8, %c0_9] : memref<256x32xf32, #tpu.memory_space<vmem>>, vector<256x32xf32>
    tpu.vector_store %arg4[%c0_8, %c0_9], %10 {strides = array<i32>} : memref<256x32xf32, #tpu.memory_space<vmem>>, vector<256x32xf32>,
    return
  }
  func.func @transform_0(%arg0: i32) -> (i32, i32) {
    %c0_i32 = arith.constant 0 : i32
    %c0_i32_0 = arith.constant 0 : i32
    return %arg0, %c0_i32 : i32, i32
  }
  func.func @transform_1(%arg0: i32) -> (i32, i32, i32) {
    %c0_i32 = arith.constant 0 : i32
    %c0_i32_0 = arith.constant 0 : i32
    %c0_i32_1 = arith.constant 0 : i32
    return %arg0, %c0_i32, %c0_i32_0 : i32, i32, i32
  }
  func.func @transform_2(%arg0: i32) -> (i32, i32, i32) {
    %c0_i32 = arith.constant 0 : i32
    %c0_i32_0 = arith.constant 0 : i32
    %c0_i32_1 = arith.constant 0 : i32
    return %arg0, %c0_i32, %c0_i32_0 : i32, i32, i32
  }
  func.func @transform_3(%arg0: i32) -> (i32, i32) {
    %c0_i32 = arith.constant 0 : i32
    %c0_i32_0 = arith.constant 0 : i32
    return %arg0, %c0_i32 : i32, i32
  }
}

module attributes {stable_mosaic.version = 11 : i64} {
  func.func @_conv_matmul_kernel(%arg0: i32, %arg1: memref<64x288xf32, #tpu.memory_space<vmem>>, %arg2: memref<1x288x16xbf16, #tpu.memory_space<vmem>>, %arg3: memref<1x1x16xf32, #tpu.memory_space<vmem>>, %arg4: memref<64x16xf32, #tpu.memory_space<vmem>>) attributes {dimension_semantics = [#tpu.dimension_semantics<parallel>], iteration_bounds = array<i64: 3>, scalar_prefetch = 0 : i64, scratch_operands = 0 : i64, tpu.core_type = #tpu.core_type<tc>, window_params = [{transform_indices = @transform_0, window_bounds = array<i64: 64, 288>}, {transform_indices = @transform_1, window_bounds = array<i64: 1, 288, 16>}, {transform_indices = @transform_2, window_bounds = array<i64: 1, 1, 16>}, {transform_indices = @transform_3, window_bounds = array<i64: 64, 16>}]} {
    %c0 = arith.constant 0 : index
    %c0_0 = arith.constant 0 : index
    %0 = vector.load %arg1[%c0, %c0_0] : memref<64x288xf32, #tpu.memory_space<vmem>>, vector<64x288xf32>
    %1 = arith.truncf %0 : vector<64x288xf32> to vector<64x288xbf16>
    %c0_1 = arith.constant 0 : index
    %c0_2 = arith.constant 0 : index
    %c0_3 = arith.constant 0 : index
    %2 = vector.load %arg2[%c0_1, %c0_2, %c0_3] : memref<1x288x16xbf16, #tpu.memory_space<vmem>>, vector<1x288x16xbf16>
    %3 = vector.shape_cast %2 : vector<1x288x16xbf16> to vector<288x16xbf16>
    %cst = arith.constant dense<0.000000e+00> : vector<64x16xf32>
    %4 = tpu.matmul %1, %3, %cst {dimension_numbers = #tpu.dot_dimension_numbers<[1], [0], [0], [1], [0, 0, 1, 1], [], []>} : vector<64x288xbf16>, vector<288x16xbf16>, vector<64x16xf32> -> vector<64x16xf32>
    %c0_4 = arith.constant 0 : index
    %c0_5 = arith.constant 0 : index
    %c0_6 = arith.constant 0 : index
    %5 = vector.load %arg3[%c0_4, %c0_5, %c0_6] : memref<1x1x16xf32, #tpu.memory_space<vmem>>, vector<1x1x16xf32>
    %6 = vector.shape_cast %5 : vector<1x1x16xf32> to vector<1x16xf32>
    %7 = vector.broadcast %6 : vector<1x16xf32> to vector<64x16xf32>
    %8 = arith.addf %4, %7 : vector<64x16xf32>
    %cst_7 = arith.constant 0.000000e+00 : f32
    %9 = vector.broadcast %cst_7 : f32 to vector<64x16xf32>
    %10 = arith.maximumf %8, %9 : vector<64x16xf32>
    %c0_8 = arith.constant 0 : index
    %c0_9 = arith.constant 0 : index
    %11 = vector.load %arg4[%c0_8, %c0_9] : memref<64x16xf32, #tpu.memory_space<vmem>>, vector<64x16xf32>
    tpu.vector_store %arg4[%c0_8, %c0_9], %10 {strides = array<i32>} : memref<64x16xf32, #tpu.memory_space<vmem>>, vector<64x16xf32>,
    return
  }
  func.func @transform_0(%arg0: i32) -> (i32, i32) {
    %c0_i32 = arith.constant 0 : i32
    %c0_i32_0 = arith.constant 0 : i32
    return %arg0, %c0_i32 : i32, i32
  }
  func.func @transform_1(%arg0: i32) -> (i32, i32, i32) {
    %c0_i32 = arith.constant 0 : i32
    %c0_i32_0 = arith.constant 0 : i32
    %c0_i32_1 = arith.constant 0 : i32
    return %arg0, %c0_i32, %c0_i32_0 : i32, i32, i32
  }
  func.func @transform_2(%arg0: i32) -> (i32, i32, i32) {
    %c0_i32 = arith.constant 0 : i32
    %c0_i32_0 = arith.constant 0 : i32
    %c0_i32_1 = arith.constant 0 : i32
    return %arg0, %c0_i32, %c0_i32_0 : i32, i32, i32
  }
  func.func @transform_3(%arg0: i32) -> (i32, i32) {
    %c0_i32 = arith.constant 0 : i32
    %c0_i32_0 = arith.constant 0 : i32
    return %arg0, %c0_i32 : i32, i32
  }
}

module attributes {stable_mosaic.version = 11 : i64} {
  func.func @_conv_matmul_kernel(%arg0: i32, %arg1: memref<16x144xf32, #tpu.memory_space<vmem>>, %arg2: memref<1x144x8xbf16, #tpu.memory_space<vmem>>, %arg3: memref<1x1x8xf32, #tpu.memory_space<vmem>>, %arg4: memref<16x8xf32, #tpu.memory_space<vmem>>) attributes {dimension_semantics = [#tpu.dimension_semantics<parallel>], iteration_bounds = array<i64: 3>, scalar_prefetch = 0 : i64, scratch_operands = 0 : i64, tpu.core_type = #tpu.core_type<tc>, window_params = [{transform_indices = @transform_0, window_bounds = array<i64: 16, 144>}, {transform_indices = @transform_1, window_bounds = array<i64: 1, 144, 8>}, {transform_indices = @transform_2, window_bounds = array<i64: 1, 1, 8>}, {transform_indices = @transform_3, window_bounds = array<i64: 16, 8>}]} {
    %c0 = arith.constant 0 : index
    %c0_0 = arith.constant 0 : index
    %0 = vector.load %arg1[%c0, %c0_0] : memref<16x144xf32, #tpu.memory_space<vmem>>, vector<16x144xf32>
    %1 = arith.truncf %0 : vector<16x144xf32> to vector<16x144xbf16>
    %c0_1 = arith.constant 0 : index
    %c0_2 = arith.constant 0 : index
    %c0_3 = arith.constant 0 : index
    %2 = vector.load %arg2[%c0_1, %c0_2, %c0_3] : memref<1x144x8xbf16, #tpu.memory_space<vmem>>, vector<1x144x8xbf16>
    %3 = vector.shape_cast %2 : vector<1x144x8xbf16> to vector<144x8xbf16>
    %cst = arith.constant dense<0.000000e+00> : vector<16x8xf32>
    %4 = tpu.matmul %1, %3, %cst {dimension_numbers = #tpu.dot_dimension_numbers<[1], [0], [0], [1], [0, 0, 1, 1], [], []>} : vector<16x144xbf16>, vector<144x8xbf16>, vector<16x8xf32> -> vector<16x8xf32>
    %c0_4 = arith.constant 0 : index
    %c0_5 = arith.constant 0 : index
    %c0_6 = arith.constant 0 : index
    %5 = vector.load %arg3[%c0_4, %c0_5, %c0_6] : memref<1x1x8xf32, #tpu.memory_space<vmem>>, vector<1x1x8xf32>
    %6 = vector.shape_cast %5 : vector<1x1x8xf32> to vector<1x8xf32>
    %7 = vector.broadcast %6 : vector<1x8xf32> to vector<16x8xf32>
    %8 = arith.addf %4, %7 : vector<16x8xf32>
    %cst_7 = arith.constant 0.000000e+00 : f32
    %9 = vector.broadcast %cst_7 : f32 to vector<16x8xf32>
    %10 = arith.maximumf %8, %9 : vector<16x8xf32>
    %c0_8 = arith.constant 0 : index
    %c0_9 = arith.constant 0 : index
    %11 = vector.load %arg4[%c0_8, %c0_9] : memref<16x8xf32, #tpu.memory_space<vmem>>, vector<16x8xf32>
    tpu.vector_store %arg4[%c0_8, %c0_9], %10 {strides = array<i32>} : memref<16x8xf32, #tpu.memory_space<vmem>>, vector<16x8xf32>,
    return
  }
  func.func @transform_0(%arg0: i32) -> (i32, i32) {
    %c0_i32 = arith.constant 0 : i32
    %c0_i32_0 = arith.constant 0 : i32
    return %arg0, %c0_i32 : i32, i32
  }
  func.func @transform_1(%arg0: i32) -> (i32, i32, i32) {
    %c0_i32 = arith.constant 0 : i32
    %c0_i32_0 = arith.constant 0 : i32
    %c0_i32_1 = arith.constant 0 : i32
    return %arg0, %c0_i32, %c0_i32_0 : i32, i32, i32
  }
  func.func @transform_2(%arg0: i32) -> (i32, i32, i32) {
    %c0_i32 = arith.constant 0 : i32
    %c0_i32_0 = arith.constant 0 : i32
    %c0_i32_1 = arith.constant 0 : i32
    return %arg0, %c0_i32, %c0_i32_0 : i32, i32, i32
  }
  func.func @transform_3(%arg0: i32) -> (i32, i32) {
    %c0_i32 = arith.constant 0 : i32
    %c0_i32_0 = arith.constant 0 : i32
    return %arg0, %c0_i32 : i32, i32
  }
}

module attributes {stable_mosaic.version = 11 : i64} {
  func.func @_head_kernel(%arg0: memref<2x153xf32, #tpu.memory_space<vmem>>, %arg1: memref<2x192xf32, #tpu.memory_space<vmem>>, %arg2: memref<153x64xbf16, #tpu.memory_space<vmem>>, %arg3: memref<1x64xf32, #tpu.memory_space<vmem>>, %arg4: memref<64x16xbf16, #tpu.memory_space<vmem>>, %arg5: memref<1x16xf32, #tpu.memory_space<vmem>>, %arg6: memref<208x208xbf16, #tpu.memory_space<vmem>>, %arg7: memref<1x208xf32, #tpu.memory_space<vmem>>, %arg8: memref<1x208xf32, #tpu.memory_space<vmem>>, %arg9: memref<1x1xf32, #tpu.memory_space<vmem>>, %arg10: memref<2x208xf32, #tpu.memory_space<vmem>>, %arg11: memref<2x1xf32, #tpu.memory_space<vmem>>) attributes {dimension_semantics = [], scalar_prefetch = 0 : i64, scratch_operands = 0 : i64, tpu.core_type = #tpu.core_type<tc>} {
    %c0 = arith.constant 0 : index
    %c0_0 = arith.constant 0 : index
    %0 = vector.load %arg0[%c0, %c0_0] : memref<2x153xf32, #tpu.memory_space<vmem>>, vector<2x153xf32>
    %1 = arith.truncf %0 : vector<2x153xf32> to vector<2x153xbf16>
    %c0_1 = arith.constant 0 : index
    %c0_2 = arith.constant 0 : index
    %2 = vector.load %arg2[%c0_1, %c0_2] : memref<153x64xbf16, #tpu.memory_space<vmem>>, vector<153x64xbf16>
    %cst = arith.constant dense<0.000000e+00> : vector<2x64xf32>
    %3 = tpu.matmul %1, %2, %cst {dimension_numbers = #tpu.dot_dimension_numbers<[1], [0], [0], [1], [0, 0, 1, 1], [], []>} : vector<2x153xbf16>, vector<153x64xbf16>, vector<2x64xf32> -> vector<2x64xf32>
    %c0_3 = arith.constant 0 : index
    %c0_4 = arith.constant 0 : index
    %4 = vector.load %arg3[%c0_3, %c0_4] : memref<1x64xf32, #tpu.memory_space<vmem>>, vector<1x64xf32>
    %5 = vector.broadcast %4 : vector<1x64xf32> to vector<2x64xf32>
    %6 = arith.addf %3, %5 : vector<2x64xf32>
    %cst_5 = arith.constant 0.000000e+00 : f32
    %7 = vector.broadcast %cst_5 : f32 to vector<2x64xf32>
    %8 = arith.maximumf %6, %7 : vector<2x64xf32>
    %9 = arith.truncf %8 : vector<2x64xf32> to vector<2x64xbf16>
    %c0_6 = arith.constant 0 : index
    %c0_7 = arith.constant 0 : index
    %10 = vector.load %arg4[%c0_6, %c0_7] : memref<64x16xbf16, #tpu.memory_space<vmem>>, vector<64x16xbf16>
    %cst_8 = arith.constant dense<0.000000e+00> : vector<2x16xf32>
    %11 = tpu.matmul %9, %10, %cst_8 {dimension_numbers = #tpu.dot_dimension_numbers<[1], [0], [0], [1], [0, 0, 1, 1], [], []>} : vector<2x64xbf16>, vector<64x16xbf16>, vector<2x16xf32> -> vector<2x16xf32>
    %c0_9 = arith.constant 0 : index
    %c0_10 = arith.constant 0 : index
    %12 = vector.load %arg5[%c0_9, %c0_10] : memref<1x16xf32, #tpu.memory_space<vmem>>, vector<1x16xf32>
    %13 = vector.broadcast %12 : vector<1x16xf32> to vector<2x16xf32>
    %14 = arith.addf %11, %13 : vector<2x16xf32>
    %cst_11 = arith.constant 0.000000e+00 : f32
    %15 = vector.broadcast %cst_11 : f32 to vector<2x16xf32>
    %16 = arith.maximumf %14, %15 : vector<2x16xf32>
    %c0_12 = arith.constant 0 : index
    %c0_13 = arith.constant 0 : index
    %17 = vector.load %arg1[%c0_12, %c0_13] : memref<2x192xf32, #tpu.memory_space<vmem>>, vector<2x192xf32>
    %18 = tpu.concatenate %16, %17 in 1 : vector<2x16xf32>, vector<2x192xf32> -> vector<2x208xf32>
    %c0_14 = arith.constant 0 : index
    %c0_15 = arith.constant 0 : index
    %19 = vector.load %arg10[%c0_14, %c0_15] : memref<2x208xf32, #tpu.memory_space<vmem>>, vector<2x208xf32>
    tpu.vector_store %arg10[%c0_14, %c0_15], %18 {strides = array<i32>} : memref<2x208xf32, #tpu.memory_space<vmem>>, vector<2x208xf32>,
    %20 = arith.truncf %18 : vector<2x208xf32> to vector<2x208xbf16>
    %c0_16 = arith.constant 0 : index
    %c0_17 = arith.constant 0 : index
    %21 = vector.load %arg6[%c0_16, %c0_17] : memref<208x208xbf16, #tpu.memory_space<vmem>>, vector<208x208xbf16>
    %cst_18 = arith.constant dense<0.000000e+00> : vector<2x208xf32>
    %22 = tpu.matmul %20, %21, %cst_18 {dimension_numbers = #tpu.dot_dimension_numbers<[1], [0], [0], [1], [0, 0, 1, 1], [], []>} : vector<2x208xbf16>, vector<208x208xbf16>, vector<2x208xf32> -> vector<2x208xf32>
    %c0_19 = arith.constant 0 : index
    %c0_20 = arith.constant 0 : index
    %23 = vector.load %arg7[%c0_19, %c0_20] : memref<1x208xf32, #tpu.memory_space<vmem>>, vector<1x208xf32>
    %24 = vector.broadcast %23 : vector<1x208xf32> to vector<2x208xf32>
    %25 = arith.addf %22, %24 : vector<2x208xf32>
    %cst_21 = arith.constant 0.000000e+00 : f32
    %26 = vector.broadcast %cst_21 : f32 to vector<2x208xf32>
    %27 = arith.maximumf %25, %26 : vector<2x208xf32>
    %c0_22 = arith.constant 0 : index
    %c0_23 = arith.constant 0 : index
    %28 = vector.load %arg8[%c0_22, %c0_23] : memref<1x208xf32, #tpu.memory_space<vmem>>, vector<1x208xf32>
    %29 = vector.broadcast %28 : vector<1x208xf32> to vector<2x208xf32>
    %30 = arith.mulf %27, %29 : vector<2x208xf32>
    %cst_24 = arith.constant dense<0.000000e+00> : vector<2xf32>
    %31 = vector.multi_reduction <add>, %30, %cst_24 [1] : vector<2x208xf32> to vector<2xf32>
    %32 = vector.shape_cast %31 : vector<2xf32> to vector<2x1xf32>
    %c0_25 = arith.constant 0 : index
    %c0_26 = arith.constant 0 : index
    %33 = vector.load %arg9[%c0_25, %c0_26] : memref<1x1xf32, #tpu.memory_space<vmem>>, vector<1x1xf32>
    %34 = vector.broadcast %33 : vector<1x1xf32> to vector<2x1xf32>
    %35 = arith.addf %32, %34 : vector<2x1xf32>
    %36 = arith.negf %35 : vector<2x1xf32>
    %37 = math.exp %36 : vector<2x1xf32>
    %cst_27 = arith.constant 1.000000e+00 : f32
    %38 = vector.broadcast %cst_27 : f32 to vector<2x1xf32>
    %39 = arith.addf %38, %37 : vector<2x1xf32>
    %40 = arith.divf %38, %39 : vector<2x1xf32>
    %c0_28 = arith.constant 0 : index
    %c0_29 = arith.constant 0 : index
    %41 = vector.load %arg11[%c0_28, %c0_29] : memref<2x1xf32, #tpu.memory_space<vmem>>, vector<2x1xf32>
    tpu.vector_store %arg11[%c0_28, %c0_29], %40 {strides = array<i32>} : memref<2x1xf32, #tpu.memory_space<vmem>>, vector<2x1xf32>,
    return
  }
}

</mosaic_0001>

<llo_original>
// kernel: encoder_forward.4
$region0: #{encoder_forward.4}
  #allocation0 [shape = 'u32[]', space=smem, size = 0x4, offset = 0x4, fixed_abs, tag = 'smem constant byte address 0x4 - core index']
  #allocation1 [shape = 'u32[72,128]{1,0:T(1,128)}', space=vmem, size = 0x9000, scoped, tag = 'internal scratch']
  %s0 = inlined_call_operand.vmem [shape: f32[768,27], index: 0, kind: input, shape index: {}]
  %s1 = inlined_call_operand.vmem [shape: bf16[3,27,32], index: 1, kind: input, shape index: {}]
  %s2 = inlined_call_operand.vmem [shape: f32[3,1,32], index: 2, kind: input, shape index: {}]
  %s3 = inlined_call_operand.vmem [shape: f32[768,32], index: 3, kind: output, shape index: {}]
  %s4 = sld [smem:[#allocation0]]
  $region45: #{encoder_forward.4} parent=0
    _
  %s6 = ssub.s32 1, %s4
  %s7 = scalar_select 0, %s6, %s4
  loop: start=0, step=1, limit=5
  $region2: #{encoder_forward.4} parent=0 // loop_pre_header
    _
  $region3: #{encoder_forward.4} parent=0 // loop_header
    %s9 = sphi 0, %s13
    %p10 = scmp.ge.s32.totalorder %s9, 5
    %s19 = sphi 0, %s21
    %s22 = sphi 0, %s19
    %s23 = sphi 0, %s22
    %s39 = sphi 0, %s23
    %s45 = sphi 0, %s47
    %s48 = sphi 0, %s45
    %s49 = sphi 0, %s48
    %s65 = sphi 0, %s49
    %s71 = sphi 0, %s73
    %s74 = sphi 0, %s71
    %s75 = sphi 0, %s74
    %s91 = sphi 0, %s75
    %s97 = sphi 0, %s99
    %s100 = sphi 0, %s97
    %s101 = sphi 0, %s100
    %s117 = sphi 0, %s101
  $region4: #{encoder_forward.4} parent=0 // loop_header_branch
    %12 = sbr.rel (%p10) target = $region8
  $region5: #{encoder_forward.4} parent=0 // loop_body
    %s14 = ssub.s32 %s9, 1
    %s15 = ssub.s32 %s9, 2
    %s16 = sadd.s32 %s9, 1
    %s17 = ssub.s32 %s9, %s16
    %p18 = scmp.eq.s32.totalorder %s17, 0
    %s20 = sadd.s32 %s19, 1
    %s21 = scalar_select %p18, %s19, %s20
    %p24 = pneg %p18
    %p25 = scmp.eq.s32.totalorder %s9, 2
    %p26 = por %p24, %p25
    %p27 = scmp.ne.s32.totalorder %s19, %s22
    %p28 = scmp.eq.s32.totalorder %s9, 0
    %p29 = por %p27, %p28
    %p30 = scmp.ne.s32.totalorder %s19, %s22
    %p31 = scmp.eq.s32.totalorder %s14, 2
    %p32 = por %p30, %p31
    %p33 = scmp.ne.s32.totalorder %s22, %s23
    %p34 = scmp.eq.s32.totalorder %s14, 0
    %p35 = por %p33, %p34
    %p36 = scmp.ne.s32.totalorder %s22, %s23
    %p37 = scmp.eq.s32.totalorder %s15, 2
    %p38 = por %p36, %p37
    %p40 = scmp.ne.s32.totalorder %s23, %s39
    %p41 = scmp.eq.s32.totalorder %s15, 0
    %p42 = por %p40, %p41
    %s43 = ssub.s32 %s9, %s16
    %p44 = scmp.eq.s32.totalorder %s43, 0
    %s46 = sadd.s32 %s45, 1
    %s47 = scalar_select %p44, %s45, %s46
    %p50 = pneg %p44
    %p51 = scmp.eq.s32.totalorder %s9, 2
    %p52 = por %p50, %p51
    %p53 = scmp.ne.s32.totalorder %s45, %s48
    %p54 = scmp.eq.s32.totalorder %s9, 0
    %p55 = por %p53, %p54
    %p56 = scmp.ne.s32.totalorder %s45, %s48
    %p57 = scmp.eq.s32.totalorder %s14, 2
    %p58 = por %p56, %p57
    %p59 = scmp.ne.s32.totalorder %s48, %s49
    %p60 = scmp.eq.s32.totalorder %s14, 0
    %p61 = por %p59, %p60
    %p62 = scmp.ne.s32.totalorder %s48, %s49
    %p63 = scmp.eq.s32.totalorder %s15, 2
    %p64 = por %p62, %p63
    %p66 = scmp.ne.s32.totalorder %s49, %s65
    %p67 = scmp.eq.s32.totalorder %s15, 0
    %p68 = por %p66, %p67
    %s69 = ssub.s32 %s9, %s16
    %p70 = scmp.eq.s32.totalorder %s69, 0
    %s72 = sadd.s32 %s71, 1
    %s73 = scalar_select %p70, %s71, %s72
    %p76 = pneg %p70
    %p77 = scmp.eq.s32.totalorder %s9, 2
    %p78 = por %p76, %p77
    %p79 = scmp.ne.s32.totalorder %s71, %s74
    %p80 = scmp.eq.s32.totalorder %s9, 0
    %p81 = por %p79, %p80
    %p82 = scmp.ne.s32.totalorder %s71, %s74
    %p83 = scmp.eq.s32.totalorder %s14, 2
    %p84 = por %p82, %p83
    %p85 = scmp.ne.s32.totalorder %s74, %s75
    %p86 = scmp.eq.s32.totalorder %s14, 0
    %p87 = por %p85, %p86
    %p88 = scmp.ne.s32.totalorder %s74, %s75
    %p89 = scmp.eq.s32.totalorder %s15, 2
    %p90 = por %p88, %p89
    %p92 = scmp.ne.s32.totalorder %s75, %s91
    %p93 = scmp.eq.s32.totalorder %s15, 0
    %p94 = por %p92, %p93
    %s95 = ssub.s32 %s9, %s16
    %p96 = scmp.eq.s32.totalorder %s95, 0
    %s98 = sadd.s32 %s97, 1
    %s99 = scalar_select %p96, %s97, %s98
    %p102 = pneg %p96
    %p103 = scmp.eq.s32.totalorder %s9, 2
    %p104 = por %p102, %p103
    %p105 = scmp.ne.s32.totalorder %s97, %s100
    %p106 = scmp.eq.s32.totalorder %s9, 0
    %p107 = por %p105, %p106
    %p108 = scmp.ne.s32.totalorder %s97, %s100
    %p109 = scmp.eq.s32.totalorder %s14, 2
    %p110 = por %p108, %p109
    %p111 = scmp.ne.s32.totalorder %s100, %s101
    %p112 = scmp.eq.s32.totalorder %s14, 0
    %p113 = por %p111, %p112
    %p114 = scmp.ne.s32.totalorder %s100, %s101
    %p115 = scmp.eq.s32.totalorder %s15, 2
    %p116 = por %p114, %p115
    %p118 = scmp.ne.s32.totalorder %s101, %s117
    %p119 = scmp.eq.s32.totalorder %s15, 0
    %p120 = por %p118, %p119
    %p121 = scmp.le.s32.totalorder 1, %s9
    %p122 = scmp.lt.s32.totalorder %s9, 4
    %p123 = pnand %p121, %p122
    %p124 = pneg %p123
    // Predicated region
    $region9: #{encoder_forward.4} parent=5 // pred_check
      _
    $region10: #{encoder_forward.4} parent=5 // pred_check_branch
      %126 = sbr.rel (%p123) target = $region12
    $region11: #{encoder_forward.4} parent=5 // pred_region
      %s127 = ssub.s32 %s9, 1
    $region12: #{encoder_forward.4} parent=5 // pred_fallthru
      _
    %p128 = scmp.lt.s32.totalorder %s9, 3
    // Predicated region
    $region13: #{encoder_forward.4} parent=5 // pred_check
      %p129 = pneg %p128
    $region14: #{encoder_forward.4} parent=5 // pred_check_branch
      %131 = sbr.rel (%p129) target = $region16
    $region15: #{encoder_forward.4} parent=5 // pred_region
      // Predicated region
      $region17: #{encoder_forward.4} parent=15 // pred_check
        %p132 = pneg %p29
      $region18: #{encoder_forward.4} parent=15 // pred_check_branch
        %134 = sbr.rel (%p132) target = $region20
      $region19: #{encoder_forward.4} parent=15 // pred_region
        %s135 = smul.u32 32, %s9
        %p136 = scmp.lt.s32.totalorder %s135, 95
        %s137 = scalar_select %p136, %s135, 95
        %s138 = smul.addr %s137, 8
        %s139 = scalar_lea.vmem %s0, %s138
        %s140 = smul.u32 32, %s9
      $region20: #{encoder_forward.4} parent=15 // pred_fallthru
        _
      // Predicated region
      $region21: #{encoder_forward.4} parent=15 // pred_check
        %p141 = pneg %p55
      $region22: #{encoder_forward.4} parent=15 // pred_check_branch
        %143 = sbr.rel (%p141) target = $region24
      $region23: #{encoder_forward.4} parent=15 // pred_region
        %p144 = scmp.lt.s32.totalorder %s9, 2
        %s145 = scalar_select %p144, %s9, 2
        %s146 = smul.addr %s145, 4
        %s147 = smul.addr %s146, 4
        %s148 = scalar_lea.vmem %s1, %s147
      $region24: #{encoder_forward.4} parent=15 // pred_fallthru
        _
      // Predicated region
      $region25: #{encoder_forward.4} parent=15 // pred_check
        %p149 = pneg %p81
      $region26: #{encoder_forward.4} parent=15 // pred_check_branch
        %151 = sbr.rel (%p149) target = $region28
      $region27: #{encoder_forward.4} parent=15 // pred_region
        %p152 = scmp.lt.s32.totalorder %s9, 2
        %s153 = scalar_select %p152, %s9, 2
        %s154 = scalar_lea.vmem %s2, %s153
      $region28: #{encoder_forward.4} parent=15 // pred_fallthru
        _
    $region16: #{encoder_forward.4} parent=5 // pred_fallthru
      _
    %p155 = scmp.le.s32.totalorder 1, %s9
    %p156 = scmp.lt.s32.totalorder %s9, 4
    %p157 = pnand %p155, %p156
    %p158 = pneg %p157
    // Predicated region
    $region29: #{encoder_forward.4} parent=5 // pred_check
      _
    $region30: #{encoder_forward.4} parent=5 // pred_check_branch
      %160 = sbr.rel (%p157) target = $region32
    $region31: #{encoder_forward.4} parent=5 // pred_region
      %s161 = ssub.s32 %s9, 1
      %s162 = smul.u32 32, %s14
      %p163 = scmp.lt.s32.totalorder %s162, 95
      %s164 = scalar_select %p163, %s162, 95
      %s165 = smul.addr %s164, 8
      %s166 = scalar_lea.vmem %s0, %s165
      %p167 = pneg %p35
      %p168 = pneg %p32
      %p169 = scmp.lt.s32.totalorder %s14, 2
      %s170 = scalar_select %p169, %s14, 2
      %s171 = smul.addr %s170, 4
      %s172 = smul.addr %s171, 4
      %s173 = scalar_lea.vmem %s1, %s172
      %p174 = pneg %p61
      %p175 = pneg %p58
      %p176 = scmp.lt.s32.totalorder %s14, 2
      %s177 = scalar_select %p176, %s14, 2
      %s178 = scalar_lea.vmem %s2, %s177
      %p179 = pneg %p87
      %p180 = pneg %p84
      %p181 = pneg %p113
      %p182 = pneg %p110
      %s183 = smul.u32 32, %s14
      %p184 = scmp.lt.s32.totalorder %s183, 95
      %s185 = scalar_select %p184, %s183, 95
      %s186 = smul.addr %s185, 8
      %s187 = scalar_lea.vmem %s3, %s186
      %s188 = smul.u32 32, %s14
      %p189 = scmp.lt.s32.totalorder %s188, 95
      %s190 = scalar_select %p189, %s188, 95
      %s191 = smul.addr %s190, 8
      %s192 = scalar_lea.vmem %s0, %s191
      %s193 = smul.u32 32, %s14
      %p194 = scmp.lt.s32.totalorder %s14, 2
      %s195 = scalar_select %p194, %s14, 2
      %s196 = smul.addr %s195, 4
      %s197 = smul.addr %s196, 4
      %s198 = scalar_lea.vmem %s1, %s197
      %p199 = scmp.lt.s32.totalorder %s14, 2
      %s200 = scalar_select %p199, %s14, 2
      %s201 = scalar_lea.vmem %s2, %s200
      %s202 = smul.u32 32, %s14
      %p203 = scmp.lt.s32.totalorder %s202, 95
      %s204 = scalar_select %p203, %s202, 95
      %s205 = smul.addr %s204, 8
      %s206 = scalar_lea.vmem %s3, %s205
      %s207 = smul.u32 32, %s14
      %v209 = vld [vmem:[%s192] sm:$0xff]
      %v210 = vld [vmem:[%s192 + $0x8] sm:$0xff]
      %v211 = vld [vmem:[%s192 + $0x10] sm:$0xff]
      %v212 = vld [vmem:[%s192 + $0x18] sm:$0xff]
      %v213 = vld [vmem:[%s192 + $0x20] sm:$0xff]
      %v214 = vld [vmem:[%s192 + $0x28] sm:$0xff]
      %v215 = vld [vmem:[%s192 + $0x30] sm:$0xff]
      %v216 = vld [vmem:[%s192 + $0x38] sm:$0xff]
      %v217 = vld [vmem:[%s192 + $0x40] sm:$0xff]
      %v218 = vld [vmem:[%s192 + $0x48] sm:$0xff]
      %v219 = vld [vmem:[%s192 + $0x50] sm:$0xff]
      %v220 = vld [vmem:[%s192 + $0x58] sm:$0xff]
      %v221 = vld [vmem:[%s192 + $0x60] sm:$0xff]
      %v222 = vld [vmem:[%s192 + $0x68] sm:$0xff]
      %v223 = vld [vmem:[%s192 + $0x70] sm:$0xff]
      %v224 = vld [vmem:[%s192 + $0x78] sm:$0xff]
      %v225 = vld [vmem:[%s192 + $0x80] sm:$0xff]
      %v226 = vld [vmem:[%s192 + $0x88] sm:$0xff]
      %v227 = vld [vmem:[%s192 + $0x90] sm:$0xff]
      %v228 = vld [vmem:[%s192 + $0x98] sm:$0xff]
      %v229 = vld [vmem:[%s192 + $0xa0] sm:$0xff]
      %v230 = vld [vmem:[%s192 + $0xa8] sm:$0xff]
      %v231 = vld [vmem:[%s192 + $0xb0] sm:$0xff]
      %v232 = vld [vmem:[%s192 + $0xb8] sm:$0xff]
      %v233 = vld [vmem:[%s192 + $0xc0] sm:$0xff]
      %v234 = vld [vmem:[%s192 + $0xc8] sm:$0xff]
      %v235 = vld [vmem:[%s192 + $0xd0] sm:$0xff]
      %v236 = vld [vmem:[%s192 + $0xd8] sm:$0xff]
      %v237 = vld [vmem:[%s192 + $0xe0] sm:$0xff]
      %v238 = vld [vmem:[%s192 + $0xe8] sm:$0xff]
      %v239 = vld [vmem:[%s192 + $0xf0] sm:$0xff]
      %v240 = vld [vmem:[%s192 + $0xf8] sm:$0xff]
      %v241 = vpack.c.bf16 %v210, %v209
      %v242 = vpack.c.bf16 %v212, %v211
      %v243 = vpack.c.bf16 %v214, %v213
      %v244 = vpack.c.bf16 %v216, %v215
      %v245 = vpack.c.bf16 %v218, %v217
      %v246 = vpack.c.bf16 %v220, %v219
      %v247 = vpack.c.bf16 %v222, %v221
      %v248 = vpack.c.bf16 %v224, %v223
      %v249 = vpack.c.bf16 %v226, %v225
      %v250 = vpack.c.bf16 %v228, %v227
      %v251 = vpack.c.bf16 %v230, %v229
      %v252 = vpack.c.bf16 %v232, %v231
      %v253 = vpack.c.bf16 %v234, %v233
      %v254 = vpack.c.bf16 %v236, %v235
      %v255 = vpack.c.bf16 %v238, %v237
      %v256 = vpack.c.bf16 %v240, %v239
      %v257 = vld [vmem:[%s198] sm:$0xf]
      %v258 = vld [vmem:[%s198 + $0x4] sm:$0xf]
      %v259 = vld [vmem:[%s198 + $0x8] sm:$0xf]
      %v260 = vld [vmem:[%s198 + $0xc] sm:$0x3]
      %v261 = vld [vmem:[%s201] sm:$0x1]
      %v263 = vperm.slane %v261, 0
      %v269 = vunpack.c.l.b16 %v257
      %v270 = vunpack.c.l.b16 %v258
      %v271 = vunpack.c.l.b16 %v259
      %v272 = vunpack.c.l.b16 %v260
      %v273 = vpack.c.b16 %v270, %v269
      %v274 = vpack.c.b16 %v272, %v271
      %vm276 = vcmask 220160
      %v278 = vsel %vm276, %v241, 0
      %v281 = vsel %vm276, %v242, 0
      %v284 = vsel %vm276, %v243, 0
      %v287 = vsel %vm276, %v244, 0
      %v290 = vsel %vm276, %v245, 0
      %v293 = vsel %vm276, %v246, 0
      %v296 = vsel %vm276, %v247, 0
      %v299 = vsel %vm276, %v248, 0
      %v302 = vsel %vm276, %v249, 0
      %v305 = vsel %vm276, %v250, 0
      %v308 = vsel %vm276, %v251, 0
      %v311 = vsel %vm276, %v252, 0
      %v314 = vsel %vm276, %v253, 0
      %v317 = vsel %vm276, %v254, 0
      %v320 = vsel %vm276, %v255, 0
      %v323 = vsel %vm276, %v256, 0
      %vm325 = vcmask 1044480
      %vm326 = vcmask 1045504
      %v327 = vsel %vm325, 4294967295, 65535
      %v328 = vsel %vm326, %v327, 0
      %v330 = vand.u32 %v274, %v328
      %332 = vmatpush.bf16.msra.mxu0 0
      %333 = vmatpush.bf16.msra.mxu0 0
      %334 = vmatpush.bf16.msra.mxu0 0
      %335 = vmatpush.bf16.msra.mxu0 0
      %336 = vmatpush.bf16.msra.mxu0 0
      %337 = vmatpush.bf16.msra.mxu0 0
      %338 = vmatpush.bf16.msra.mxu0 %v330
      %339 = vmatpush.bf16.msra.mxu0 %v273
      %340 = vmatmul.bf16.gmra.mxu0 %v278
      %v341 = vpop.f32.mrf.mxu0
      %v342 = vadd.f32 %v263, %v341
      %v343 = vpop.f32.mrf.mxu0
      %v344 = vadd.f32 %v263, %v343
      %345 = vmatmul.bf16.gmra.mxu0 %v281
      %v346 = vpop.f32.mrf.mxu0
      %v347 = vadd.f32 %v263, %v346
      %v348 = vpop.f32.mrf.mxu0
      %v349 = vadd.f32 %v263, %v348
      %350 = vmatmul.bf16.gmra.mxu0 %v284
      %v351 = vpop.f32.mrf.mxu0
      %v352 = vadd.f32 %v263, %v351
      %v353 = vpop.f32.mrf.mxu0
      %v354 = vadd.f32 %v263, %v353
      %355 = vmatmul.bf16.gmra.mxu0 %v287
      %v356 = vpop.f32.mrf.mxu0
      %v357 = vadd.f32 %v263, %v356
      %v358 = vpop.f32.mrf.mxu0
      %v359 = vadd.f32 %v263, %v358
      %360 = vmatmul.bf16.gmra.mxu0 %v290
      %v361 = vpop.f32.mrf.mxu0
      %v362 = vadd.f32 %v263, %v361
      %v363 = vpop.f32.mrf.mxu0
      %v364 = vadd.f32 %v263, %v363
      %365 = vmatmul.bf16.gmra.mxu0 %v293
      %v366 = vpop.f32.mrf.mxu0
      %v367 = vadd.f32 %v263, %v366
      %v368 = vpop.f32.mrf.mxu0
      %v369 = vadd.f32 %v263, %v368
      %370 = vmatmul.bf16.gmra.mxu0 %v296
      %v371 = vpop.f32.mrf.mxu0
      %v372 = vadd.f32 %v263, %v371
      %v373 = vpop.f32.mrf.mxu0
      %v374 = vadd.f32 %v263, %v373
      %375 = vmatmul.bf16.gmra.mxu0 %v299
      %v376 = vpop.f32.mrf.mxu0
      %v377 = vadd.f32 %v263, %v376
      %v378 = vpop.f32.mrf.mxu0
      %v379 = vadd.f32 %v263, %v378
      %380 = vmatmul.bf16.gmra.mxu0 %v302
      %v381 = vpop.f32.mrf.mxu0
      %v382 = vadd.f32 %v263, %v381
      %v383 = vpop.f32.mrf.mxu0
      %v384 = vadd.f32 %v263, %v383
      %385 = vmatmul.bf16.gmra.mxu0 %v305
      %v386 = vpop.f32.mrf.mxu0
      %v387 = vadd.f32 %v263, %v386
      %v388 = vpop.f32.mrf.mxu0
      %v389 = vadd.f32 %v263, %v388
      %390 = vmatmul.bf16.gmra.mxu0 %v308
      %v391 = vpop.f32.mrf.mxu0
      %v392 = vadd.f32 %v263, %v391
      %v393 = vpop.f32.mrf.mxu0
      %v394 = vadd.f32 %v263, %v393
      %395 = vmatmul.bf16.gmra.mxu0 %v311
      %v396 = vpop.f32.mrf.mxu0
      %v397 = vadd.f32 %v263, %v396
      %v398 = vpop.f32.mrf.mxu0
      %v399 = vadd.f32 %v263, %v398
      %400 = vmatmul.bf16.gmra.mxu0 %v314
      %v401 = vpop.f32.mrf.mxu0
      %v402 = vadd.f32 %v263, %v401
      %v403 = vpop.f32.mrf.mxu0
      %v404 = vadd.f32 %v263, %v403
      %405 = vmatmul.bf16.gmra.mxu0 %v317
      %v406 = vpop.f32.mrf.mxu0
      %v407 = vadd.f32 %v263, %v406
      %v408 = vpop.f32.mrf.mxu0
      %v409 = vadd.f32 %v263, %v408
      %410 = vmatmul.bf16.gmra.mxu0 %v320
      %v411 = vpop.f32.mrf.mxu0
      %v412 = vadd.f32 %v263, %v411
      %v413 = vpop.f32.mrf.mxu0
      %v414 = vadd.f32 %v263, %v413
      %415 = vmatmul.bf16.gmra.mxu0 %v323
      %v416 = vpop.f32.mrf.mxu0
      %v417 = vadd.f32 %v263, %v416
      %v418 = vpop.f32.mrf.mxu0
      %v419 = vadd.f32 %v263, %v418
      %420 = vdwg.mxu0
      %v421 = vmax.f32 %v342, 0.0
      %v422 = vmax.f32 %v344, 0.0
      %v423 = vmax.f32 %v347, 0.0
      %v424 = vmax.f32 %v349, 0.0
      %v425 = vmax.f32 %v352, 0.0
      %v426 = vmax.f32 %v354, 0.0
      %v427 = vmax.f32 %v357, 0.0
      %v428 = vmax.f32 %v359, 0.0
      %v429 = vmax.f32 %v362, 0.0
      %v430 = vmax.f32 %v364, 0.0
      %v431 = vmax.f32 %v367, 0.0
      %v432 = vmax.f32 %v369, 0.0
      %v433 = vmax.f32 %v372, 0.0
      %v434 = vmax.f32 %v374, 0.0
      %v435 = vmax.f32 %v377, 0.0
      %v436 = vmax.f32 %v379, 0.0
      %v437 = vmax.f32 %v382, 0.0
      %v438 = vmax.f32 %v384, 0.0
      %v439 = vmax.f32 %v387, 0.0
      %v440 = vmax.f32 %v389, 0.0
      %v441 = vmax.f32 %v392, 0.0
      %v442 = vmax.f32 %v394, 0.0
      %v443 = vmax.f32 %v397, 0.0
      %v444 = vmax.f32 %v399, 0.0
      %v445 = vmax.f32 %v402, 0.0
      %v446 = vmax.f32 %v404, 0.0
      %v447 = vmax.f32 %v407, 0.0
      %v448 = vmax.f32 %v409, 0.0
      %v449 = vmax.f32 %v412, 0.0
      %v450 = vmax.f32 %v414, 0.0
      %v451 = vmax.f32 %v417, 0.0
      %v452 = vmax.f32 %v419, 0.0
      %vm453 = vcmask 261120
      %454 = vst.msk [vmem:[%s206] sm:$0xff] %vm453, %v421
      %455 = vst.msk [vmem:[%s206 + $0x8] sm:$0xff] %vm453, %v422
      %456 = vst.msk [vmem:[%s206 + $0x10] sm:$0xff] %vm453, %v423
      %457 = vst.msk [vmem:[%s206 + $0x18] sm:$0xff] %vm453, %v424
      %458 = vst.msk [vmem:[%s206 + $0x20] sm:$0xff] %vm453, %v425
      %459 = vst.msk [vmem:[%s206 + $0x28] sm:$0xff] %vm453, %v426
      %460 = vst.msk [vmem:[%s206 + $0x30] sm:$0xff] %vm453, %v427
      %461 = vst.msk [vmem:[%s206 + $0x38] sm:$0xff] %vm453, %v428
      %462 = vst.msk [vmem:[%s206 + $0x40] sm:$0xff] %vm453, %v429
      %463 = vst.msk [vmem:[%s206 + $0x48] sm:$0xff] %vm453, %v430
      %464 = vst.msk [vmem:[%s206 + $0x50] sm:$0xff] %vm453, %v431
      %465 = vst.msk [vmem:[%s206 + $0x58] sm:$0xff] %vm453, %v432
      %466 = vst.msk [vmem:[%s206 + $0x60] sm:$0xff] %vm453, %v433
      %467 = vst.msk [vmem:[%s206 + $0x68] sm:$0xff] %vm453, %v434
      %468 = vst.msk [vmem:[%s206 + $0x70] sm:$0xff] %vm453, %v435
      %469 = vst.msk [vmem:[%s206 + $0x78] sm:$0xff] %vm453, %v436
      %470 = vst.msk [vmem:[%s206 + $0x80] sm:$0xff] %vm453, %v437
      %471 = vst.msk [vmem:[%s206 + $0x88] sm:$0xff] %vm453, %v438
      %472 = vst.msk [vmem:[%s206 + $0x90] sm:$0xff] %vm453, %v439
      %473 = vst.msk [vmem:[%s206 + $0x98] sm:$0xff] %vm453, %v440
      %474 = vst.msk [vmem:[%s206 + $0xa0] sm:$0xff] %vm453, %v441
      %475 = vst.msk [vmem:[%s206 + $0xa8] sm:$0xff] %vm453, %v442
      %476 = vst.msk [vmem:[%s206 + $0xb0] sm:$0xff] %vm453, %v443
      %477 = vst.msk [vmem:[%s206 + $0xb8] sm:$0xff] %vm453, %v444
      %478 = vst.msk [vmem:[%s206 + $0xc0] sm:$0xff] %vm453, %v445
      %479 = vst.msk [vmem:[%s206 + $0xc8] sm:$0xff] %vm453, %v446
      %480 = vst.msk [vmem:[%s206 + $0xd0] sm:$0xff] %vm453, %v447
      %481 = vst.msk [vmem:[%s206 + $0xd8] sm:$0xff] %vm453, %v448
      %482 = vst.msk [vmem:[%s206 + $0xe0] sm:$0xff] %vm453, %v449
      %483 = vst.msk [vmem:[%s206 + $0xe8] sm:$0xff] %vm453, %v450
      %484 = vst.msk [vmem:[%s206 + $0xf0] sm:$0xff] %vm453, %v451
      %485 = vst.msk [vmem:[%s206 + $0xf8] sm:$0xff] %vm453, %v452
      %s486 = smul.u32 32, %s14
      %p487 = scmp.lt.s32.totalorder %s486, 95
      %s488 = scalar_select %p487, %s486, 95
      %s489 = smul.addr %s488, 8
      %s490 = scalar_lea.vmem %s3, %s489
      // Predicated region
      $region33: #{encoder_forward.4} parent=31 // pred_check
        %p491 = pneg %p110
      $region34: #{encoder_forward.4} parent=31 // pred_check_branch
        %493 = sbr.rel (%p491) target = $region36
      $region35: #{encoder_forward.4} parent=31 // pred_region
        %s494 = smul.u32 32, %s14
      $region36: #{encoder_forward.4} parent=31 // pred_fallthru
        _
    $region32: #{encoder_forward.4} parent=5 // pred_fallthru
      _
    %p495 = scmp.le.s32.totalorder 2, %s9
    // Predicated region
    $region37: #{encoder_forward.4} parent=5 // pred_check
      %p496 = pneg %p495
    $region38: #{encoder_forward.4} parent=5 // pred_check_branch
      %498 = sbr.rel (%p496) target = $region40
    $region39: #{encoder_forward.4} parent=5 // pred_region
      %s499 = ssub.s32 %s9, 2
      // Predicated region
      $region41: #{encoder_forward.4} parent=39 // pred_check
        %p500 = pneg %p116
      $region42: #{encoder_forward.4} parent=39 // pred_check_branch
        %502 = sbr.rel (%p500) target = $region44
      $region43: #{encoder_forward.4} parent=39 // pred_region
        %s503 = smul.u32 32, %s15
        %p504 = scmp.lt.s32.totalorder %s503, 95
        %s505 = scalar_select %p504, %s503, 95
        %s506 = smul.addr %s505, 8
        %s507 = scalar_lea.vmem %s3, %s506
      $region44: #{encoder_forward.4} parent=39 // pred_fallthru
        _
    $region40: #{encoder_forward.4} parent=5 // pred_fallthru
      _
  $region6: #{encoder_forward.4} parent=0 // loop_footer
    %s13 = sadd.s32 1, %s9
  $region7: #{encoder_forward.4} parent=0 // loop_footer_branch
    %8 = sbr.rel target = $region3
  $region8: #{encoder_forward.4} parent=0 // loop_exit
    _

// kernel: encoder_forward.5
$region0: #{encoder_forward.5}
  #allocation0 [shape = 'u32[]', space=smem, size = 0x4, offset = 0x4, fixed_abs, tag = 'smem constant byte address 0x4 - core index']
  #allocation1 [shape = 'u32[72,128]{1,0:T(1,128)}', space=vmem, size = 0x9000, scoped, tag = 'internal scratch']
  %s0 = inlined_call_operand.vmem [shape: f32[192,288], index: 0, kind: input, shape index: {}]
  %s1 = inlined_call_operand.vmem [shape: bf16[3,288,16], index: 1, kind: input, shape index: {}]
  %s2 = inlined_call_operand.vmem [shape: f32[3,1,16], index: 2, kind: input, shape index: {}]
  %s3 = inlined_call_operand.vmem [shape: f32[192,16], index: 3, kind: output, shape index: {}]
  %s4 = sld [smem:[#allocation0]]
  $region45: #{encoder_forward.5} parent=0
    _
  %s6 = ssub.s32 1, %s4
  %s7 = scalar_select 0, %s6, %s4
  loop: start=0, step=1, limit=5
  $region2: #{encoder_forward.5} parent=0 // loop_pre_header
    _
  $region3: #{encoder_forward.5} parent=0 // loop_header
    %s9 = sphi 0, %s13
    %p10 = scmp.ge.s32.totalorder %s9, 5
    %s19 = sphi 0, %s21
    %s22 = sphi 0, %s19
    %s23 = sphi 0, %s22
    %s39 = sphi 0, %s23
    %s45 = sphi 0, %s47
    %s48 = sphi 0, %s45
    %s49 = sphi 0, %s48
    %s65 = sphi 0, %s49
    %s71 = sphi 0, %s73
    %s74 = sphi 0, %s71
    %s75 = sphi 0, %s74
    %s91 = sphi 0, %s75
    %s97 = sphi 0, %s99
    %s100 = sphi 0, %s97
    %s101 = sphi 0, %s100
    %s117 = sphi 0, %s101
  $region4: #{encoder_forward.5} parent=0 // loop_header_branch
    %12 = sbr.rel (%p10) target = $region8
  $region5: #{encoder_forward.5} parent=0 // loop_body
    %s14 = ssub.s32 %s9, 1
    %s15 = ssub.s32 %s9, 2
    %s16 = sadd.s32 %s9, 1
    %s17 = ssub.s32 %s9, %s16
    %p18 = scmp.eq.s32.totalorder %s17, 0
    %s20 = sadd.s32 %s19, 1
    %s21 = scalar_select %p18, %s19, %s20
    %p24 = pneg %p18
    %p25 = scmp.eq.s32.totalorder %s9, 2
    %p26 = por %p24, %p25
    %p27 = scmp.ne.s32.totalorder %s19, %s22
    %p28 = scmp.eq.s32.totalorder %s9, 0
    %p29 = por %p27, %p28
    %p30 = scmp.ne.s32.totalorder %s19, %s22
    %p31 = scmp.eq.s32.totalorder %s14, 2
    %p32 = por %p30, %p31
    %p33 = scmp.ne.s32.totalorder %s22, %s23
    %p34 = scmp.eq.s32.totalorder %s14, 0
    %p35 = por %p33, %p34
    %p36 = scmp.ne.s32.totalorder %s22, %s23
    %p37 = scmp.eq.s32.totalorder %s15, 2
    %p38 = por %p36, %p37
    %p40 = scmp.ne.s32.totalorder %s23, %s39
    %p41 = scmp.eq.s32.totalorder %s15, 0
    %p42 = por %p40, %p41
    %s43 = ssub.s32 %s9, %s16
    %p44 = scmp.eq.s32.totalorder %s43, 0
    %s46 = sadd.s32 %s45, 1
    %s47 = scalar_select %p44, %s45, %s46
    %p50 = pneg %p44
    %p51 = scmp.eq.s32.totalorder %s9, 2
    %p52 = por %p50, %p51
    %p53 = scmp.ne.s32.totalorder %s45, %s48
    %p54 = scmp.eq.s32.totalorder %s9, 0
    %p55 = por %p53, %p54
    %p56 = scmp.ne.s32.totalorder %s45, %s48
    %p57 = scmp.eq.s32.totalorder %s14, 2
    %p58 = por %p56, %p57
    %p59 = scmp.ne.s32.totalorder %s48, %s49
    %p60 = scmp.eq.s32.totalorder %s14, 0
    %p61 = por %p59, %p60
    %p62 = scmp.ne.s32.totalorder %s48, %s49
    %p63 = scmp.eq.s32.totalorder %s15, 2
    %p64 = por %p62, %p63
    %p66 = scmp.ne.s32.totalorder %s49, %s65
    %p67 = scmp.eq.s32.totalorder %s15, 0
    %p68 = por %p66, %p67
    %s69 = ssub.s32 %s9, %s16
    %p70 = scmp.eq.s32.totalorder %s69, 0
    %s72 = sadd.s32 %s71, 1
    %s73 = scalar_select %p70, %s71, %s72
    %p76 = pneg %p70
    %p77 = scmp.eq.s32.totalorder %s9, 2
    %p78 = por %p76, %p77
    %p79 = scmp.ne.s32.totalorder %s71, %s74
    %p80 = scmp.eq.s32.totalorder %s9, 0
    %p81 = por %p79, %p80
    %p82 = scmp.ne.s32.totalorder %s71, %s74
    %p83 = scmp.eq.s32.totalorder %s14, 2
    %p84 = por %p82, %p83
    %p85 = scmp.ne.s32.totalorder %s74, %s75
    %p86 = scmp.eq.s32.totalorder %s14, 0
    %p87 = por %p85, %p86
    %p88 = scmp.ne.s32.totalorder %s74, %s75
    %p89 = scmp.eq.s32.totalorder %s15, 2
    %p90 = por %p88, %p89
    %p92 = scmp.ne.s32.totalorder %s75, %s91
    %p93 = scmp.eq.s32.totalorder %s15, 0
    %p94 = por %p92, %p93
    %s95 = ssub.s32 %s9, %s16
    %p96 = scmp.eq.s32.totalorder %s95, 0
    %s98 = sadd.s32 %s97, 1
    %s99 = scalar_select %p96, %s97, %s98
    %p102 = pneg %p96
    %p103 = scmp.eq.s32.totalorder %s9, 2
    %p104 = por %p102, %p103
    %p105 = scmp.ne.s32.totalorder %s97, %s100
    %p106 = scmp.eq.s32.totalorder %s9, 0
    %p107 = por %p105, %p106
    %p108 = scmp.ne.s32.totalorder %s97, %s100
    %p109 = scmp.eq.s32.totalorder %s14, 2
    %p110 = por %p108, %p109
    %p111 = scmp.ne.s32.totalorder %s100, %s101
    %p112 = scmp.eq.s32.totalorder %s14, 0
    %p113 = por %p111, %p112
    %p114 = scmp.ne.s32.totalorder %s100, %s101
    %p115 = scmp.eq.s32.totalorder %s15, 2
    %p116 = por %p114, %p115
    %p118 = scmp.ne.s32.totalorder %s101, %s117
    %p119 = scmp.eq.s32.totalorder %s15, 0
    %p120 = por %p118, %p119
    %p121 = scmp.le.s32.totalorder 1, %s9
    %p122 = scmp.lt.s32.totalorder %s9, 4
    %p123 = pnand %p121, %p122
    %p124 = pneg %p123
    // Predicated region
    $region9: #{encoder_forward.5} parent=5 // pred_check
      _
    $region10: #{encoder_forward.5} parent=5 // pred_check_branch
      %126 = sbr.rel (%p123) target = $region12
    $region11: #{encoder_forward.5} parent=5 // pred_region
      %s127 = ssub.s32 %s9, 1
    $region12: #{encoder_forward.5} parent=5 // pred_fallthru
      _
    %p128 = scmp.lt.s32.totalorder %s9, 3
    // Predicated region
    $region13: #{encoder_forward.5} parent=5 // pred_check
      %p129 = pneg %p128
    $region14: #{encoder_forward.5} parent=5 // pred_check_branch
      %131 = sbr.rel (%p129) target = $region16
    $region15: #{encoder_forward.5} parent=5 // pred_region
      // Predicated region
      $region17: #{encoder_forward.5} parent=15 // pred_check
        %p132 = pneg %p29
      $region18: #{encoder_forward.5} parent=15 // pred_check_branch
        %134 = sbr.rel (%p132) target = $region20
      $region19: #{encoder_forward.5} parent=15 // pred_region
        %s135 = smul.u32 8, %s9
        %p136 = scmp.lt.s32.totalorder %s135, 23
        %s137 = scalar_select %p136, %s135, 23
        %s138 = smul.addr %s137, 3
        %s139 = smul.addr %s138, 8
        %s140 = scalar_lea.vmem %s0, %s139
        %s141 = smul.u32 8, %s9
      $region20: #{encoder_forward.5} parent=15 // pred_fallthru
        _
      // Predicated region
      $region21: #{encoder_forward.5} parent=15 // pred_check
        %p142 = pneg %p55
      $region22: #{encoder_forward.5} parent=15 // pred_check_branch
        %144 = sbr.rel (%p142) target = $region24
      $region23: #{encoder_forward.5} parent=15 // pred_region
        %p145 = scmp.lt.s32.totalorder %s9, 2
        %s146 = scalar_select %p145, %s9, 2
        %s147 = smul.addr %s146, 36
        %s148 = smul.addr %s147, 4
        %s149 = scalar_lea.vmem %s1, %s148
      $region24: #{encoder_forward.5} parent=15 // pred_fallthru
        _
      // Predicated region
      $region25: #{encoder_forward.5} parent=15 // pred_check
        %p150 = pneg %p81
      $region26: #{encoder_forward.5} parent=15 // pred_check_branch
        %152 = sbr.rel (%p150) target = $region28
      $region27: #{encoder_forward.5} parent=15 // pred_region
        %p153 = scmp.lt.s32.totalorder %s9, 2
        %s154 = scalar_select %p153, %s9, 2
        %s155 = scalar_lea.vmem %s2, %s154
      $region28: #{encoder_forward.5} parent=15 // pred_fallthru
        _
    $region16: #{encoder_forward.5} parent=5 // pred_fallthru
      _
    %p156 = scmp.le.s32.totalorder 1, %s9
    %p157 = scmp.lt.s32.totalorder %s9, 4
    %p158 = pnand %p156, %p157
    %p159 = pneg %p158
    // Predicated region
    $region29: #{encoder_forward.5} parent=5 // pred_check
      _
    $region30: #{encoder_forward.5} parent=5 // pred_check_branch
      %161 = sbr.rel (%p158) target = $region32
    $region31: #{encoder_forward.5} parent=5 // pred_region
      %s162 = ssub.s32 %s9, 1
      %s163 = smul.u32 8, %s14
      %p164 = scmp.lt.s32.totalorder %s163, 23
      %s165 = scalar_select %p164, %s163, 23
      %s166 = smul.addr %s165, 3
      %s167 = smul.addr %s166, 8
      %s168 = scalar_lea.vmem %s0, %s167
      %p169 = pneg %p35
      %p170 = pneg %p32
      %p171 = scmp.lt.s32.totalorder %s14, 2
      %s172 = scalar_select %p171, %s14, 2
      %s173 = smul.addr %s172, 36
      %s174 = smul.addr %s173, 4
      %s175 = scalar_lea.vmem %s1, %s174
      %p176 = pneg %p61
      %p177 = pneg %p58
      %p178 = scmp.lt.s32.totalorder %s14, 2
      %s179 = scalar_select %p178, %s14, 2
      %s180 = scalar_lea.vmem %s2, %s179
      %p181 = pneg %p87
      %p182 = pneg %p84
      %p183 = pneg %p113
      %p184 = pneg %p110
      %s185 = smul.u32 8, %s14
      %p186 = scmp.lt.s32.totalorder %s185, 23
      %s187 = scalar_select %p186, %s185, 23
      %s188 = smul.addr %s187, 8
      %s189 = scalar_lea.vmem %s3, %s188
      %s190 = smul.u32 8, %s14
      %p191 = scmp.lt.s32.totalorder %s190, 23
      %s192 = scalar_select %p191, %s190, 23
      %s193 = smul.addr %s192, 3
      %s194 = smul.addr %s193, 8
      %s195 = scalar_lea.vmem %s0, %s194
      %s196 = smul.u32 8, %s14
      %p197 = scmp.lt.s32.totalorder %s14, 2
      %s198 = scalar_select %p197, %s14, 2
      %s199 = smul.addr %s198, 36
      %s200 = smul.addr %s199, 4
      %s201 = scalar_lea.vmem %s1, %s200
      %p202 = scmp.lt.s32.totalorder %s14, 2
      %s203 = scalar_select %p202, %s14, 2
      %s204 = scalar_lea.vmem %s2, %s203
      %s205 = smul.u32 8, %s14
      %p206 = scmp.lt.s32.totalorder %s205, 23
      %s207 = scalar_select %p206, %s205, 23
      %s208 = smul.addr %s207, 8
      %s209 = scalar_lea.vmem %s3, %s208
      %s210 = smul.u32 8, %s14
      %v212 = vld [vmem:[%s195] sm:$0xff]
      %v213 = vld [vmem:[%s195 + $0x8] sm:$0xff]
      %v214 = vld [vmem:[%s195 + $0x10] sm:$0xff]
      %v215 = vld [vmem:[%s195 + $0x18] sm:$0xff]
      %v216 = vld [vmem:[%s195 + $0x20] sm:$0xff]
      %v217 = vld [vmem:[%s195 + $0x28] sm:$0xff]
      %v218 = vld [vmem:[%s195 + $0x30] sm:$0xff]
      %v219 = vld [vmem:[%s195 + $0x38] sm:$0xff]
      %v220 = vld [vmem:[%s195 + $0x40] sm:$0xff]
      %v221 = vld [vmem:[%s195 + $0x48] sm:$0xff]
      %v222 = vld [vmem:[%s195 + $0x50] sm:$0xff]
      %v223 = vld [vmem:[%s195 + $0x58] sm:$0xff]
      %v224 = vld [vmem:[%s195 + $0x60] sm:$0xff]
      %v225 = vld [vmem:[%s195 + $0x68] sm:$0xff]
      %v226 = vld [vmem:[%s195 + $0x70] sm:$0xff]
      %v227 = vld [vmem:[%s195 + $0x78] sm:$0xff]
      %v228 = vld [vmem:[%s195 + $0x80] sm:$0xff]
      %v229 = vld [vmem:[%s195 + $0x88] sm:$0xff]
      %v230 = vld [vmem:[%s195 + $0x90] sm:$0xff]
      %v231 = vld [vmem:[%s195 + $0x98] sm:$0xff]
      %v232 = vld [vmem:[%s195 + $0xa0] sm:$0xff]
      %v233 = vld [vmem:[%s195 + $0xa8] sm:$0xff]
      %v234 = vld [vmem:[%s195 + $0xb0] sm:$0xff]
      %v235 = vld [vmem:[%s195 + $0xb8] sm:$0xff]
      %v236 = vpack.c.bf16 %v215, %v212
      %v237 = vpack.c.bf16 %v216, %v213
      %v238 = vpack.c.bf16 %v217, %v214
      %v239 = vpack.c.bf16 %v221, %v218
      %v240 = vpack.c.bf16 %v222, %v219
      %v241 = vpack.c.bf16 %v223, %v220
      %v242 = vpack.c.bf16 %v227, %v224
      %v243 = vpack.c.bf16 %v228, %v225
      %v244 = vpack.c.bf16 %v229, %v226
      %v245 = vpack.c.bf16 %v233, %v230
      %v246 = vpack.c.bf16 %v234, %v231
      %v247 = vpack.c.bf16 %v235, %v232
      %v248 = vld [vmem:[%s201] sm:$0xf]
      %v249 = vld [vmem:[%s201 + $0x4] sm:$0xf]
      %v250 = vld [vmem:[%s201 + $0x8] sm:$0xf]
      %v251 = vld [vmem:[%s201 + $0xc] sm:$0xf]
      %v252 = vld [vmem:[%s201 + $0x10] sm:$0xf]
      %v253 = vld [vmem:[%s201 + $0x14] sm:$0xf]
      %v254 = vld [vmem:[%s201 + $0x18] sm:$0xf]
      %v255 = vld [vmem:[%s201 + $0x1c] sm:$0xf]
      %v256 = vld [vmem:[%s201 + $0x20] sm:$0xf]
      %v257 = vld [vmem:[%s201 + $0x24] sm:$0xf]
      %v258 = vld [vmem:[%s201 + $0x28] sm:$0xf]
      %v259 = vld [vmem:[%s201 + $0x2c] sm:$0xf]
      %v260 = vld [vmem:[%s201 + $0x30] sm:$0xf]
      %v261 = vld [vmem:[%s201 + $0x34] sm:$0xf]
      %v262 = vld [vmem:[%s201 + $0x38] sm:$0xf]
      %v263 = vld [vmem:[%s201 + $0x3c] sm:$0xf]
      %v264 = vld [vmem:[%s201 + $0x40] sm:$0xf]
      %v265 = vld [vmem:[%s201 + $0x44] sm:$0xf]
      %v266 = vld [vmem:[%s201 + $0x48] sm:$0xf]
      %v267 = vld [vmem:[%s201 + $0x4c] sm:$0xf]
      %v268 = vld [vmem:[%s201 + $0x50] sm:$0xf]
      %v269 = vld [vmem:[%s201 + $0x54] sm:$0xf]
      %v270 = vld [vmem:[%s201 + $0x58] sm:$0xf]
      %v271 = vld [vmem:[%s201 + $0x5c] sm:$0xf]
      %v272 = vld [vmem:[%s201 + $0x60] sm:$0xf]
      %v273 = vld [vmem:[%s201 + $0x64] sm:$0xf]
      %v274 = vld [vmem:[%s201 + $0x68] sm:$0xf]
      %v275 = vld [vmem:[%s201 + $0x6c] sm:$0xf]
      %v276 = vld [vmem:[%s201 + $0x70] sm:$0xf]
      %v277 = vld [vmem:[%s201 + $0x74] sm:$0xf]
      %v278 = vld [vmem:[%s201 + $0x78] sm:$0xf]
      %v279 = vld [vmem:[%s201 + $0x7c] sm:$0xf]
      %v280 = vld [vmem:[%s201 + $0x80] sm:$0xf]
      %v281 = vld [vmem:[%s201 + $0x84] sm:$0xf]
      %v282 = vld [vmem:[%s201 + $0x88] sm:$0xf]
      %v283 = vld [vmem:[%s201 + $0x8c] sm:$0xf]
      %v284 = vld [vmem:[%s204] sm:$0x1]
      %v286 = vperm.slane %v284, 0
      %v324 = vunpack.c.l.b16 %v248
      %v325 = vunpack.c.l.b16 %v249
      %v326 = vunpack.c.l.b16 %v250
      %v327 = vunpack.c.l.b16 %v251
      %v328 = vunpack.c.l.b16 %v252
      %v329 = vunpack.c.l.b16 %v253
      %v330 = vunpack.c.l.b16 %v254
      %v331 = vunpack.c.l.b16 %v255
      %v332 = vunpack.c.l.b16 %v256
      %v333 = vunpack.c.l.b16 %v257
      %v334 = vunpack.c.l.b16 %v258
      %v335 = vunpack.c.l.b16 %v259
      %v336 = vunpack.c.l.b16 %v260
      %v337 = vunpack.c.l.b16 %v261
      %v338 = vunpack.c.l.b16 %v262
      %v339 = vunpack.c.l.b16 %v263
      %v340 = vunpack.c.l.b16 %v264
      %v341 = vunpack.c.l.b16 %v265
      %v342 = vunpack.c.l.b16 %v266
      %v343 = vunpack.c.l.b16 %v267
      %v344 = vunpack.c.l.b16 %v268
      %v345 = vunpack.c.l.b16 %v269
      %v346 = vunpack.c.l.b16 %v270
      %v347 = vunpack.c.l.b16 %v271
      %v348 = vunpack.c.l.b16 %v272
      %v349 = vunpack.c.l.b16 %v273
      %v350 = vunpack.c.l.b16 %v274
      %v351 = vunpack.c.l.b16 %v275
      %v352 = vunpack.c.l.b16 %v276
      %v353 = vunpack.c.l.b16 %v277
      %v354 = vunpack.c.l.b16 %v278
      %v355 = vunpack.c.l.b16 %v279
      %v356 = vunpack.c.l.b16 %v280
      %v357 = vunpack.c.l.b16 %v281
      %v358 = vunpack.c.l.b16 %v282
      %v359 = vunpack.c.l.b16 %v283
      %v360 = vpack.c.b16 %v325, %v324
      %v361 = vpack.c.b16 %v327, %v326
      %v362 = vpack.c.b16 %v329, %v328
      %v363 = vpack.c.b16 %v331, %v330
      %v364 = vpack.c.b16 %v333, %v332
      %v365 = vpack.c.b16 %v335, %v334
      %v366 = vpack.c.b16 %v337, %v336
      %v367 = vpack.c.b16 %v339, %v338
      %v368 = vpack.c.b16 %v341, %v340
      %v369 = vpack.c.b16 %v343, %v342
      %v370 = vpack.c.b16 %v345, %v344
      %v371 = vpack.c.b16 %v347, %v346
      %v372 = vpack.c.b16 %v349, %v348
      %v373 = vpack.c.b16 %v351, %v350
      %v374 = vpack.c.b16 %v353, %v352
      %v375 = vpack.c.b16 %v355, %v354
      %v376 = vpack.c.b16 %v357, %v356
      %v377 = vpack.c.b16 %v359, %v358
      %vm396 = vcmask 261120
      %v398 = vsel %vm396, %v238, 0
      %v401 = vsel %vm396, %v241, 0
      %v404 = vsel %vm396, %v244, 0
      %v407 = vsel %vm396, %v247, 0
      %409 = vmatpush.bf16.msra.mxu0 %v367
      %410 = vmatpush.bf16.msra.mxu0 %v366
      %411 = vmatpush.bf16.msra.mxu0 %v365
      %412 = vmatpush.bf16.msra.mxu0 %v364
      %413 = vmatpush.bf16.msra.mxu0 %v363
      %414 = vmatpush.bf16.msra.mxu0 %v362
      %415 = vmatpush.bf16.msra.mxu0 %v361
      %416 = vmatpush.bf16.msra.mxu0 %v360
      %417 = vmatmul.bf16.gmra.mxu0 %v236
      %v418 = vpop.f32.mrf.mxu0
      %v419 = vadd.f32 %v286, %v418
      %v420 = vpop.f32.mrf.mxu0
      %v421 = vadd.f32 %v286, %v420
      %422 = vmatmul.bf16.gmra.mxu0 %v239
      %v423 = vpop.f32.mrf.mxu0
      %v424 = vadd.f32 %v286, %v423
      %v425 = vpop.f32.mrf.mxu0
      %v426 = vadd.f32 %v286, %v425
      %427 = vmatmul.bf16.gmra.mxu0 %v242
      %v428 = vpop.f32.mrf.mxu0
      %v429 = vadd.f32 %v286, %v428
      %v430 = vpop.f32.mrf.mxu0
      %v431 = vadd.f32 %v286, %v430
      %432 = vmatmul.bf16.gmra.mxu0 %v245
      %v433 = vpop.f32.mrf.mxu0
      %v434 = vadd.f32 %v286, %v433
      %v435 = vpop.f32.mrf.mxu0
      %v436 = vadd.f32 %v286, %v435
      %437 = vdwg.mxu0
      %438 = vmatpush.bf16.msra.mxu0 %v375
      %439 = vmatpush.bf16.msra.mxu0 %v374
      %440 = vmatpush.bf16.msra.mxu0 %v373
      %441 = vmatpush.bf16.msra.mxu0 %v372
      %442 = vmatpush.bf16.msra.mxu0 %v371
      %443 = vmatpush.bf16.msra.mxu0 %v370
      %444 = vmatpush.bf16.msra.mxu0 %v369
      %445 = vmatpush.bf16.msra.mxu0 %v368
      %446 = vmatmul.bf16.gmra.mxu0 %v237
      %v447 = vpop.f32.mrf.mxu0
      %v448 = vadd.f32 %v419, %v447
      %v449 = vpop.f32.mrf.mxu0
      %v450 = vadd.f32 %v421, %v449
      %451 = vmatmul.bf16.gmra.mxu0 %v240
      %v452 = vpop.f32.mrf.mxu0
      %v453 = vadd.f32 %v424, %v452
      %v454 = vpop.f32.mrf.mxu0
      %v455 = vadd.f32 %v426, %v454
      %456 = vmatmul.bf16.gmra.mxu0 %v243
      %v457 = vpop.f32.mrf.mxu0
      %v458 = vadd.f32 %v429, %v457
      %v459 = vpop.f32.mrf.mxu0
      %v460 = vadd.f32 %v431, %v459
      %461 = vmatmul.bf16.gmra.mxu0 %v246
      %v462 = vpop.f32.mrf.mxu0
      %v463 = vadd.f32 %v434, %v462
      %v464 = vpop.f32.mrf.mxu0
      %v465 = vadd.f32 %v436, %v464
      %466 = vdwg.mxu0
      %467 = vmatpush.bf16.msra.mxu0 0
      %468 = vmatpush.bf16.msra.mxu0 0
      %469 = vmatpush.bf16.msra.mxu0 0
      %470 = vmatpush.bf16.msra.mxu0 0
      %471 = vmatpush.bf16.msra.mxu0 0
      %472 = vmatpush.bf16.msra.mxu0 0
      %473 = vmatpush.bf16.msra.mxu0 %v377
      %474 = vmatpush.bf16.msra.mxu0 %v376
      %475 = vmatmul.bf16.gmra.mxu0 %v398
      %v476 = vpop.f32.mrf.mxu0
      %v477 = vadd.f32 %v448, %v476
      %v478 = vpop.f32.mrf.mxu0
      %v479 = vadd.f32 %v450, %v478
      %480 = vmatmul.bf16.gmra.mxu0 %v401
      %v481 = vpop.f32.mrf.mxu0
      %v482 = vadd.f32 %v453, %v481
      %v483 = vpop.f32.mrf.mxu0
      %v484 = vadd.f32 %v455, %v483
      %485 = vmatmul.bf16.gmra.mxu0 %v404
      %v486 = vpop.f32.mrf.mxu0
      %v487 = vadd.f32 %v458, %v486
      %v488 = vpop.f32.mrf.mxu0
      %v489 = vadd.f32 %v460, %v488
      %490 = vmatmul.bf16.gmra.mxu0 %v407
      %v491 = vpop.f32.mrf.mxu0
      %v492 = vadd.f32 %v463, %v491
      %v493 = vpop.f32.mrf.mxu0
      %v494 = vadd.f32 %v465, %v493
      %495 = vdwg.mxu0
      %v496 = vmax.f32 %v477, 0.0
      %v497 = vmax.f32 %v479, 0.0
      %v498 = vmax.f32 %v482, 0.0
      %v499 = vmax.f32 %v484, 0.0
      %v500 = vmax.f32 %v487, 0.0
      %v501 = vmax.f32 %v489, 0.0
      %v502 = vmax.f32 %v492, 0.0
      %v503 = vmax.f32 %v494, 0.0
      %vm504 = vcmask 130048
      %505 = vst.msk [vmem:[%s209] sm:$0xff] %vm504, %v496
      %506 = vst.msk [vmem:[%s209 + $0x8] sm:$0xff] %vm504, %v497
      %507 = vst.msk [vmem:[%s209 + $0x10] sm:$0xff] %vm504, %v498
      %508 = vst.msk [vmem:[%s209 + $0x18] sm:$0xff] %vm504, %v499
      %509 = vst.msk [vmem:[%s209 + $0x20] sm:$0xff] %vm504, %v500
      %510 = vst.msk [vmem:[%s209 + $0x28] sm:$0xff] %vm504, %v501
      %511 = vst.msk [vmem:[%s209 + $0x30] sm:$0xff] %vm504, %v502
      %512 = vst.msk [vmem:[%s209 + $0x38] sm:$0xff] %vm504, %v503
      %s513 = smul.u32 8, %s14
      %p514 = scmp.lt.s32.totalorder %s513, 23
      %s515 = scalar_select %p514, %s513, 23
      %s516 = smul.addr %s515, 8
      %s517 = scalar_lea.vmem %s3, %s516
      // Predicated region
      $region33: #{encoder_forward.5} parent=31 // pred_check
        %p518 = pneg %p110
      $region34: #{encoder_forward.5} parent=31 // pred_check_branch
        %520 = sbr.rel (%p518) target = $region36
      $region35: #{encoder_forward.5} parent=31 // pred_region
        %s521 = smul.u32 8, %s14
      $region36: #{encoder_forward.5} parent=31 // pred_fallthru
        _
    $region32: #{encoder_forward.5} parent=5 // pred_fallthru
      _
    %p522 = scmp.le.s32.totalorder 2, %s9
    // Predicated region
    $region37: #{encoder_forward.5} parent=5 // pred_check
      %p523 = pneg %p522
    $region38: #{encoder_forward.5} parent=5 // pred_check_branch
      %525 = sbr.rel (%p523) target = $region40
    $region39: #{encoder_forward.5} parent=5 // pred_region
      %s526 = ssub.s32 %s9, 2
      // Predicated region
      $region41: #{encoder_forward.5} parent=39 // pred_check
        %p527 = pneg %p116
      $region42: #{encoder_forward.5} parent=39 // pred_check_branch
        %529 = sbr.rel (%p527) target = $region44
      $region43: #{encoder_forward.5} parent=39 // pred_region
        %s530 = smul.u32 8, %s15
        %p531 = scmp.lt.s32.totalorder %s530, 23
        %s532 = scalar_select %p531, %s530, 23
        %s533 = smul.addr %s532, 8
        %s534 = scalar_lea.vmem %s3, %s533
      $region44: #{encoder_forward.5} parent=39 // pred_fallthru
        _
    $region40: #{encoder_forward.5} parent=5 // pred_fallthru
      _
  $region6: #{encoder_forward.5} parent=0 // loop_footer
    %s13 = sadd.s32 1, %s9
  $region7: #{encoder_forward.5} parent=0 // loop_footer_branch
    %8 = sbr.rel target = $region3
  $region8: #{encoder_forward.5} parent=0 // loop_exit
    _

// kernel: encoder_forward.6
$region0: #{encoder_forward.6}
  #allocation0 [shape = 'u32[]', space=smem, size = 0x4, offset = 0x4, fixed_abs, tag = 'smem constant byte address 0x4 - core index']
  #allocation1 [shape = 'u32[72,128]{1,0:T(1,128)}', space=vmem, size = 0x9000, scoped, tag = 'internal scratch']
  %s0 = inlined_call_operand.vmem [shape: f32[48,144], index: 0, kind: input, shape index: {}]
  %s1 = inlined_call_operand.vmem [shape: bf16[3,144,8], index: 1, kind: input, shape index: {}]
  %s2 = inlined_call_operand.vmem [shape: f32[3,1,8], index: 2, kind: input, shape index: {}]
  %s3 = inlined_call_operand.vmem [shape: f32[48,8], index: 3, kind: output, shape index: {}]
  %s4 = sld [smem:[#allocation0]]
  $region45: #{encoder_forward.6} parent=0
    _
  %s6 = ssub.s32 1, %s4
  %s7 = scalar_select 0, %s6, %s4
  loop: start=0, step=1, limit=5
  $region2: #{encoder_forward.6} parent=0 // loop_pre_header
    _
  $region3: #{encoder_forward.6} parent=0 // loop_header
    %s9 = sphi 0, %s13
    %p10 = scmp.ge.s32.totalorder %s9, 5
    %s19 = sphi 0, %s21
    %s22 = sphi 0, %s19
    %s23 = sphi 0, %s22
    %s39 = sphi 0, %s23
    %s45 = sphi 0, %s47
    %s48 = sphi 0, %s45
    %s49 = sphi 0, %s48
    %s65 = sphi 0, %s49
    %s71 = sphi 0, %s73
    %s74 = sphi 0, %s71
    %s75 = sphi 0, %s74
    %s91 = sphi 0, %s75
    %s97 = sphi 0, %s99
    %s100 = sphi 0, %s97
    %s101 = sphi 0, %s100
    %s117 = sphi 0, %s101
  $region4: #{encoder_forward.6} parent=0 // loop_header_branch
    %12 = sbr.rel (%p10) target = $region8
  $region5: #{encoder_forward.6} parent=0 // loop_body
    %s14 = ssub.s32 %s9, 1
    %s15 = ssub.s32 %s9, 2
    %s16 = sadd.s32 %s9, 1
    %s17 = ssub.s32 %s9, %s16
    %p18 = scmp.eq.s32.totalorder %s17, 0
    %s20 = sadd.s32 %s19, 1
    %s21 = scalar_select %p18, %s19, %s20
    %p24 = pneg %p18
    %p25 = scmp.eq.s32.totalorder %s9, 2
    %p26 = por %p24, %p25
    %p27 = scmp.ne.s32.totalorder %s19, %s22
    %p28 = scmp.eq.s32.totalorder %s9, 0
    %p29 = por %p27, %p28
    %p30 = scmp.ne.s32.totalorder %s19, %s22
    %p31 = scmp.eq.s32.totalorder %s14, 2
    %p32 = por %p30, %p31
    %p33 = scmp.ne.s32.totalorder %s22, %s23
    %p34 = scmp.eq.s32.totalorder %s14, 0
    %p35 = por %p33, %p34
    %p36 = scmp.ne.s32.totalorder %s22, %s23
    %p37 = scmp.eq.s32.totalorder %s15, 2
    %p38 = por %p36, %p37
    %p40 = scmp.ne.s32.totalorder %s23, %s39
    %p41 = scmp.eq.s32.totalorder %s15, 0
    %p42 = por %p40, %p41
    %s43 = ssub.s32 %s9, %s16
    %p44 = scmp.eq.s32.totalorder %s43, 0
    %s46 = sadd.s32 %s45, 1
    %s47 = scalar_select %p44, %s45, %s46
    %p50 = pneg %p44
    %p51 = scmp.eq.s32.totalorder %s9, 2
    %p52 = por %p50, %p51
    %p53 = scmp.ne.s32.totalorder %s45, %s48
    %p54 = scmp.eq.s32.totalorder %s9, 0
    %p55 = por %p53, %p54
    %p56 = scmp.ne.s32.totalorder %s45, %s48
    %p57 = scmp.eq.s32.totalorder %s14, 2
    %p58 = por %p56, %p57
    %p59 = scmp.ne.s32.totalorder %s48, %s49
    %p60 = scmp.eq.s32.totalorder %s14, 0
    %p61 = por %p59, %p60
    %p62 = scmp.ne.s32.totalorder %s48, %s49
    %p63 = scmp.eq.s32.totalorder %s15, 2
    %p64 = por %p62, %p63
    %p66 = scmp.ne.s32.totalorder %s49, %s65
    %p67 = scmp.eq.s32.totalorder %s15, 0
    %p68 = por %p66, %p67
    %s69 = ssub.s32 %s9, %s16
    %p70 = scmp.eq.s32.totalorder %s69, 0
    %s72 = sadd.s32 %s71, 1
    %s73 = scalar_select %p70, %s71, %s72
    %p76 = pneg %p70
    %p77 = scmp.eq.s32.totalorder %s9, 2
    %p78 = por %p76, %p77
    %p79 = scmp.ne.s32.totalorder %s71, %s74
    %p80 = scmp.eq.s32.totalorder %s9, 0
    %p81 = por %p79, %p80
    %p82 = scmp.ne.s32.totalorder %s71, %s74
    %p83 = scmp.eq.s32.totalorder %s14, 2
    %p84 = por %p82, %p83
    %p85 = scmp.ne.s32.totalorder %s74, %s75
    %p86 = scmp.eq.s32.totalorder %s14, 0
    %p87 = por %p85, %p86
    %p88 = scmp.ne.s32.totalorder %s74, %s75
    %p89 = scmp.eq.s32.totalorder %s15, 2
    %p90 = por %p88, %p89
    %p92 = scmp.ne.s32.totalorder %s75, %s91
    %p93 = scmp.eq.s32.totalorder %s15, 0
    %p94 = por %p92, %p93
    %s95 = ssub.s32 %s9, %s16
    %p96 = scmp.eq.s32.totalorder %s95, 0
    %s98 = sadd.s32 %s97, 1
    %s99 = scalar_select %p96, %s97, %s98
    %p102 = pneg %p96
    %p103 = scmp.eq.s32.totalorder %s9, 2
    %p104 = por %p102, %p103
    %p105 = scmp.ne.s32.totalorder %s97, %s100
    %p106 = scmp.eq.s32.totalorder %s9, 0
    %p107 = por %p105, %p106
    %p108 = scmp.ne.s32.totalorder %s97, %s100
    %p109 = scmp.eq.s32.totalorder %s14, 2
    %p110 = por %p108, %p109
    %p111 = scmp.ne.s32.totalorder %s100, %s101
    %p112 = scmp.eq.s32.totalorder %s14, 0
    %p113 = por %p111, %p112
    %p114 = scmp.ne.s32.totalorder %s100, %s101
    %p115 = scmp.eq.s32.totalorder %s15, 2
    %p116 = por %p114, %p115
    %p118 = scmp.ne.s32.totalorder %s101, %s117
    %p119 = scmp.eq.s32.totalorder %s15, 0
    %p120 = por %p118, %p119
    %p121 = scmp.le.s32.totalorder 1, %s9
    %p122 = scmp.lt.s32.totalorder %s9, 4
    %p123 = pnand %p121, %p122
    %p124 = pneg %p123
    // Predicated region
    $region9: #{encoder_forward.6} parent=5 // pred_check
      _
    $region10: #{encoder_forward.6} parent=5 // pred_check_branch
      %126 = sbr.rel (%p123) target = $region12
    $region11: #{encoder_forward.6} parent=5 // pred_region
      %s127 = ssub.s32 %s9, 1
    $region12: #{encoder_forward.6} parent=5 // pred_fallthru
      _
    %p128 = scmp.lt.s32.totalorder %s9, 3
    // Predicated region
    $region13: #{encoder_forward.6} parent=5 // pred_check
      %p129 = pneg %p128
    $region14: #{encoder_forward.6} parent=5 // pred_check_branch
      %131 = sbr.rel (%p129) target = $region16
    $region15: #{encoder_forward.6} parent=5 // pred_region
      // Predicated region
      $region17: #{encoder_forward.6} parent=15 // pred_check
        %p132 = pneg %p29
      $region18: #{encoder_forward.6} parent=15 // pred_check_branch
        %134 = sbr.rel (%p132) target = $region20
      $region19: #{encoder_forward.6} parent=15 // pred_region
        %s135 = smul.u32 2, %s9
        %p136 = scmp.lt.s32.totalorder %s135, 5
        %s137 = scalar_select %p136, %s135, 5
        %s138 = smul.addr %s137, 2
        %s139 = smul.addr %s138, 8
        %s140 = scalar_lea.vmem %s0, %s139
        %s141 = smul.u32 2, %s9
      $region20: #{encoder_forward.6} parent=15 // pred_fallthru
        _
      // Predicated region
      $region21: #{encoder_forward.6} parent=15 // pred_check
        %p142 = pneg %p55
      $region22: #{encoder_forward.6} parent=15 // pred_check_branch
        %144 = sbr.rel (%p142) target = $region24
      $region23: #{encoder_forward.6} parent=15 // pred_region
        %p145 = scmp.lt.s32.totalorder %s9, 2
        %s146 = scalar_select %p145, %s9, 2
        %s147 = smul.addr %s146, 18
        %s148 = smul.addr %s147, 4
        %s149 = scalar_lea.vmem %s1, %s148
      $region24: #{encoder_forward.6} parent=15 // pred_fallthru
        _
      // Predicated region
      $region25: #{encoder_forward.6} parent=15 // pred_check
        %p150 = pneg %p81
      $region26: #{encoder_forward.6} parent=15 // pred_check_branch
        %152 = sbr.rel (%p150) target = $region28
      $region27: #{encoder_forward.6} parent=15 // pred_region
        %p153 = scmp.lt.s32.totalorder %s9, 2
        %s154 = scalar_select %p153, %s9, 2
        %s155 = scalar_lea.vmem %s2, %s154
      $region28: #{encoder_forward.6} parent=15 // pred_fallthru
        _
    $region16: #{encoder_forward.6} parent=5 // pred_fallthru
      _
    %p156 = scmp.le.s32.totalorder 1, %s9
    %p157 = scmp.lt.s32.totalorder %s9, 4
    %p158 = pnand %p156, %p157
    %p159 = pneg %p158
    // Predicated region
    $region29: #{encoder_forward.6} parent=5 // pred_check
      _
    $region30: #{encoder_forward.6} parent=5 // pred_check_branch
      %161 = sbr.rel (%p158) target = $region32
    $region31: #{encoder_forward.6} parent=5 // pred_region
      %s162 = ssub.s32 %s9, 1
      %s163 = smul.u32 2, %s14
      %p164 = scmp.lt.s32.totalorder %s163, 5
      %s165 = scalar_select %p164, %s163, 5
      %s166 = smul.addr %s165, 2
      %s167 = smul.addr %s166, 8
      %s168 = scalar_lea.vmem %s0, %s167
      %p169 = pneg %p35
      %p170 = pneg %p32
      %p171 = scmp.lt.s32.totalorder %s14, 2
      %s172 = scalar_select %p171, %s14, 2
      %s173 = smul.addr %s172, 18
      %s174 = smul.addr %s173, 4
      %s175 = scalar_lea.vmem %s1, %s174
      %p176 = pneg %p61
      %p177 = pneg %p58
      %p178 = scmp.lt.s32.totalorder %s14, 2
      %s179 = scalar_select %p178, %s14, 2
      %s180 = scalar_lea.vmem %s2, %s179
      %p181 = pneg %p87
      %p182 = pneg %p84
      %p183 = pneg %p113
      %p184 = pneg %p110
      %s185 = smul.u32 2, %s14
      %p186 = scmp.lt.s32.totalorder %s185, 5
      %s187 = scalar_select %p186, %s185, 5
      %s188 = smul.addr %s187, 8
      %s189 = scalar_lea.vmem %s3, %s188
      %s190 = smul.u32 2, %s14
      %p191 = scmp.lt.s32.totalorder %s190, 5
      %s192 = scalar_select %p191, %s190, 5
      %s193 = smul.addr %s192, 2
      %s194 = smul.addr %s193, 8
      %s195 = scalar_lea.vmem %s0, %s194
      %s196 = smul.u32 2, %s14
      %p197 = scmp.lt.s32.totalorder %s14, 2
      %s198 = scalar_select %p197, %s14, 2
      %s199 = smul.addr %s198, 18
      %s200 = smul.addr %s199, 4
      %s201 = scalar_lea.vmem %s1, %s200
      %p202 = scmp.lt.s32.totalorder %s14, 2
      %s203 = scalar_select %p202, %s14, 2
      %s204 = scalar_lea.vmem %s2, %s203
      %s205 = smul.u32 2, %s14
      %p206 = scmp.lt.s32.totalorder %s205, 5
      %s207 = scalar_select %p206, %s205, 5
      %s208 = smul.addr %s207, 8
      %s209 = scalar_lea.vmem %s3, %s208
      %s210 = smul.u32 2, %s14
      %v212 = vld [vmem:[%s195] sm:$0xff]
      %v213 = vld [vmem:[%s195 + $0x8] sm:$0xff]
      %v214 = vld [vmem:[%s195 + $0x10] sm:$0xff]
      %v215 = vld [vmem:[%s195 + $0x18] sm:$0xff]
      %v216 = vpack.c.bf16 %v214, %v212
      %v217 = vpack.c.bf16 %v215, %v213
      %v218 = vld [vmem:[%s201] sm:$0xf]
      %v219 = vld [vmem:[%s201 + $0x4] sm:$0xf]
      %v220 = vld [vmem:[%s201 + $0x8] sm:$0xf]
      %v221 = vld [vmem:[%s201 + $0xc] sm:$0xf]
      %v222 = vld [vmem:[%s201 + $0x10] sm:$0xf]
      %v223 = vld [vmem:[%s201 + $0x14] sm:$0xf]
      %v224 = vld [vmem:[%s201 + $0x18] sm:$0xf]
      %v225 = vld [vmem:[%s201 + $0x1c] sm:$0xf]
      %v226 = vld [vmem:[%s201 + $0x20] sm:$0xf]
      %v227 = vld [vmem:[%s201 + $0x24] sm:$0xf]
      %v228 = vld [vmem:[%s201 + $0x28] sm:$0xf]
      %v229 = vld [vmem:[%s201 + $0x2c] sm:$0xf]
      %v230 = vld [vmem:[%s201 + $0x30] sm:$0xf]
      %v231 = vld [vmem:[%s201 + $0x34] sm:$0xf]
      %v232 = vld [vmem:[%s201 + $0x38] sm:$0xf]
      %v233 = vld [vmem:[%s201 + $0x3c] sm:$0xf]
      %v234 = vld [vmem:[%s201 + $0x40] sm:$0xf]
      %v235 = vld [vmem:[%s201 + $0x44] sm:$0xf]
      %v236 = vld [vmem:[%s204] sm:$0x1]
      %v238 = vperm.slane %v236, 0
      %v258 = vunpack.c.l.b16 %v218
      %v259 = vunpack.c.l.b16 %v219
      %v260 = vunpack.c.l.b16 %v220
      %v261 = vunpack.c.l.b16 %v221
      %v262 = vunpack.c.l.b16 %v222
      %v263 = vunpack.c.l.b16 %v223
      %v264 = vunpack.c.l.b16 %v224
      %v265 = vunpack.c.l.b16 %v225
      %v266 = vunpack.c.l.b16 %v226
      %v267 = vunpack.c.l.b16 %v227
      %v268 = vunpack.c.l.b16 %v228
      %v269 = vunpack.c.l.b16 %v229
      %v270 = vunpack.c.l.b16 %v230
      %v271 = vunpack.c.l.b16 %v231
      %v272 = vunpack.c.l.b16 %v232
      %v273 = vunpack.c.l.b16 %v233
      %v274 = vunpack.c.l.b16 %v234
      %v275 = vunpack.c.l.b16 %v235
      %v276 = vpack.c.b16 %v259, %v258
      %v277 = vpack.c.b16 %v261, %v260
      %v278 = vpack.c.b16 %v263, %v262
      %v279 = vpack.c.b16 %v265, %v264
      %v280 = vpack.c.b16 %v267, %v266
      %v281 = vpack.c.b16 %v269, %v268
      %v282 = vpack.c.b16 %v271, %v270
      %v283 = vpack.c.b16 %v273, %v272
      %v284 = vpack.c.b16 %v275, %v274
      %vm294 = vcmask 130048
      %v296 = vsel %vm294, %v217, 0
      %298 = vmatpush.bf16.msra.mxu0 %v283
      %299 = vmatpush.bf16.msra.mxu0 %v282
      %300 = vmatpush.bf16.msra.mxu0 %v281
      %301 = vmatpush.bf16.msra.mxu0 %v280
      %302 = vmatpush.bf16.msra.mxu0 %v279
      %303 = vmatpush.bf16.msra.mxu0 %v278
      %304 = vmatpush.bf16.msra.mxu0 %v277
      %305 = vmatpush.bf16.msra.mxu0 %v276
      %306 = vmatmul.bf16.gmra.mxu0 %v216
      %v307 = vpop.f32.mrf.mxu0
      %v308 = vadd.f32 %v238, %v307
      %v309 = vpop.f32.mrf.mxu0
      %v310 = vadd.f32 %v238, %v309
      %311 = vdwg.mxu0
      %312 = vmatpush.bf16.msra.mxu0 0
      %313 = vmatpush.bf16.msra.mxu0 0
      %314 = vmatpush.bf16.msra.mxu0 0
      %315 = vmatpush.bf16.msra.mxu0 0
      %316 = vmatpush.bf16.msra.mxu0 0
      %317 = vmatpush.bf16.msra.mxu0 0
      %318 = vmatpush.bf16.msra.mxu0 0
      %319 = vmatpush.bf16.msra.mxu0 %v284
      %320 = vmatmul.bf16.gmra.mxu0 %v296
      %v321 = vpop.f32.mrf.mxu0
      %v322 = vadd.f32 %v308, %v321
      %v323 = vpop.f32.mrf.mxu0
      %v324 = vadd.f32 %v310, %v323
      %325 = vdwg.mxu0
      %v326 = vmax.f32 %v322, 0.0
      %v327 = vmax.f32 %v324, 0.0
      %vm328 = vcmask 64512
      %329 = vst.msk [vmem:[%s209] sm:$0xff] %vm328, %v326
      %330 = vst.msk [vmem:[%s209 + $0x8] sm:$0xff] %vm328, %v327
      %s331 = smul.u32 2, %s14
      %p332 = scmp.lt.s32.totalorder %s331, 5
      %s333 = scalar_select %p332, %s331, 5
      %s334 = smul.addr %s333, 8
      %s335 = scalar_lea.vmem %s3, %s334
      // Predicated region
      $region33: #{encoder_forward.6} parent=31 // pred_check
        %p336 = pneg %p110
      $region34: #{encoder_forward.6} parent=31 // pred_check_branch
        %338 = sbr.rel (%p336) target = $region36
      $region35: #{encoder_forward.6} parent=31 // pred_region
        %s339 = smul.u32 2, %s14
      $region36: #{encoder_forward.6} parent=31 // pred_fallthru
        _
    $region32: #{encoder_forward.6} parent=5 // pred_fallthru
      _
    %p340 = scmp.le.s32.totalorder 2, %s9
    // Predicated region
    $region37: #{encoder_forward.6} parent=5 // pred_check
      %p341 = pneg %p340
    $region38: #{encoder_forward.6} parent=5 // pred_check_branch
      %343 = sbr.rel (%p341) target = $region40
    $region39: #{encoder_forward.6} parent=5 // pred_region
      %s344 = ssub.s32 %s9, 2
      // Predicated region
      $region41: #{encoder_forward.6} parent=39 // pred_check
        %p345 = pneg %p116
      $region42: #{encoder_forward.6} parent=39 // pred_check_branch
        %347 = sbr.rel (%p345) target = $region44
      $region43: #{encoder_forward.6} parent=39 // pred_region
        %s348 = smul.u32 2, %s15
        %p349 = scmp.lt.s32.totalorder %s348, 5
        %s350 = scalar_select %p349, %s348, 5
        %s351 = smul.addr %s350, 8
        %s352 = scalar_lea.vmem %s3, %s351
      $region44: #{encoder_forward.6} parent=39 // pred_fallthru
        _
    $region40: #{encoder_forward.6} parent=5 // pred_fallthru
      _
  $region6: #{encoder_forward.6} parent=0 // loop_footer
    %s13 = sadd.s32 1, %s9
  $region7: #{encoder_forward.6} parent=0 // loop_footer_branch
    %8 = sbr.rel target = $region3
  $region8: #{encoder_forward.6} parent=0 // loop_exit
    _

// kernel: encoder_forward.7
$region0: #{encoder_forward.7}
  #allocation0 [shape = 'u32[]', space=smem, size = 0x4, offset = 0x4, fixed_abs, tag = 'smem constant byte address 0x4 - core index']
  #allocation1 [shape = 'u32[72,128]{1,0:T(1,128)}', space=vmem, size = 0x9000, scoped, tag = 'internal scratch']
  #allocation2 [shape = 'f32[1,1]{1,0:T(1,128)S(1)}', space=vmem, size = 0x200, scoped, tag = 'scoped memory for encoder_forward.7']
  %s0 = inlined_call_operand.vmem [shape: f32[2,153], index: 0, kind: input, shape index: {}]
  %s1 = inlined_call_operand.vmem [shape: f32[2,192], index: 1, kind: input, shape index: {}]
  %s2 = inlined_call_operand.vmem [shape: bf16[153,64], index: 2, kind: input, shape index: {}]
  %s3 = inlined_call_operand.vmem [shape: f32[1,64], index: 3, kind: input, shape index: {}]
  %s4 = inlined_call_operand.vmem [shape: bf16[64,16], index: 4, kind: input, shape index: {}]
  %s5 = inlined_call_operand.vmem [shape: f32[1,16], index: 5, kind: input, shape index: {}]
  %s6 = inlined_call_operand.vmem [shape: bf16[208,208], index: 6, kind: input, shape index: {}]
  %s7 = inlined_call_operand.vmem [shape: f32[1,208], index: 7, kind: input, shape index: {}]
  %s8 = inlined_call_operand.vmem [shape: f32[1,208], index: 8, kind: input, shape index: {}]
  %s9 = inlined_call_operand.<no memory space> [shape: f32[1,1], index: 9, kind: input, shape index: {}]
  %s10 = inlined_call_operand.hbm [shape: f32[2,208], index: 10, kind: output, shape index: {0}]
  %s11 = inlined_call_operand.vmem [shape: f32[2,1], index: 11, kind: output, shape index: {1}]
  %12 = xla_tuple %s10, %s11
  %s13 = sld [smem:[#allocation0]]
  $region58: #{encoder_forward.7} parent=0
    _
  %s15 = ssub.s32 1, %s13
  %s16 = scalar_select 0, %s15, %s13
  %v17 = vstv %s9
  %18 = vst [vmem:[#allocation2] sm:$0x1] %v17
  $region1: #{encoder_forward.7} parent=0
    #allocation3 [shape = 'u8[2048]{0}', space=vmem, size = 0x800, scoped, tag = 'output window, operand 0, single buffered']
    #allocation4 [shape = 's32[1]{0}', space=sflag, size = 0x4, scoped, tag = 'scoped memory for encoder_forward.7']
    %19 = vsyncpa [#allocation4], 0
    // Predicated region
    $region2: #{encoder_forward.7} parent=1 // pred_check
      _
    $region3: #{encoder_forward.7} parent=1 // pred_check_branch
      %21 = sbr.rel (0) target = $region5
    $region4: #{encoder_forward.7} parent=1 // pred_region
      _
    $region5: #{encoder_forward.7} parent=1 // pred_fallthru
      _
    // Predicated region
    $region6: #{encoder_forward.7} parent=1 // pred_check
      _
    $region7: #{encoder_forward.7} parent=1 // pred_check_branch
      %23 = sbr.rel (0) target = $region9
    $region8: #{encoder_forward.7} parent=1 // pred_region
      _
    $region9: #{encoder_forward.7} parent=1 // pred_fallthru
      _
    // Predicated region
    $region10: #{encoder_forward.7} parent=1 // pred_check
      _
    $region11: #{encoder_forward.7} parent=1 // pred_check_branch
      %25 = sbr.rel (0) target = $region13
    $region12: #{encoder_forward.7} parent=1 // pred_region
      _
    $region13: #{encoder_forward.7} parent=1 // pred_fallthru
      _
    // Predicated region
    $region14: #{encoder_forward.7} parent=1 // pred_check
      _
    $region15: #{encoder_forward.7} parent=1 // pred_check_branch
      %27 = sbr.rel (0) target = $region17
    $region16: #{encoder_forward.7} parent=1 // pred_region
      _
    $region17: #{encoder_forward.7} parent=1 // pred_fallthru
      _
    // Predicated region
    $region18: #{encoder_forward.7} parent=1 // pred_check
      _
    $region19: #{encoder_forward.7} parent=1 // pred_check_branch
      %29 = sbr.rel (0) target = $region21
    $region20: #{encoder_forward.7} parent=1 // pred_region
      _
    $region21: #{encoder_forward.7} parent=1 // pred_fallthru
      _
    // Predicated region
    $region22: #{encoder_forward.7} parent=1 // pred_check
      _
    $region23: #{encoder_forward.7} parent=1 // pred_check_branch
      %31 = sbr.rel (0) target = $region25
    $region24: #{encoder_forward.7} parent=1 // pred_region
      _
    $region25: #{encoder_forward.7} parent=1 // pred_fallthru
      _
    // Predicated region
    $region26: #{encoder_forward.7} parent=1 // pred_check
      _
    $region27: #{encoder_forward.7} parent=1 // pred_check_branch
      %33 = sbr.rel (0) target = $region29
    $region28: #{encoder_forward.7} parent=1 // pred_region
      _
    $region29: #{encoder_forward.7} parent=1 // pred_fallthru
      _
    // Predicated region
    $region30: #{encoder_forward.7} parent=1 // pred_check
      _
    $region31: #{encoder_forward.7} parent=1 // pred_check_branch
      %35 = sbr.rel (0) target = $region33
    $region32: #{encoder_forward.7} parent=1 // pred_region
      _
    $region33: #{encoder_forward.7} parent=1 // pred_fallthru
      _
    // Predicated region
    $region34: #{encoder_forward.7} parent=1 // pred_check
      _
    $region35: #{encoder_forward.7} parent=1 // pred_check_branch
      %37 = sbr.rel (0) target = $region37
    $region36: #{encoder_forward.7} parent=1 // pred_region
      _
    $region37: #{encoder_forward.7} parent=1 // pred_fallthru
      _
    // Predicated region
    $region38: #{encoder_forward.7} parent=1 // pred_check
      _
    $region39: #{encoder_forward.7} parent=1 // pred_check_branch
      %39 = sbr.rel (0) target = $region41
    $region40: #{encoder_forward.7} parent=1 // pred_region
      _
    $region41: #{encoder_forward.7} parent=1 // pred_fallthru
      _
    %v41 = vld [vmem:[%s0] sm:$0xf]
    %43 = vst [vmem:[#allocation1] ss:$4 sm:$0xff] %v41
    %v44 = vld.sshfl [vmem:[#allocation1] sm:$0xff pattern:$0x73625140]
    %v45 = vld.sshfl [vmem:[#allocation1 + $0x8] sm:$0xff pattern:$0x73625140]
    %v48 = vpack.c.bf16 %v44, %v44
    %v49 = vpack.c.bf16 %v45, %v45
    %v50 = vld [vmem:[%s2] sm:$0xf]
    %v51 = vld [vmem:[%s2 + $0x4] sm:$0xf]
    %v52 = vld [vmem:[%s2 + $0x8] sm:$0xf]
    %v53 = vld [vmem:[%s2 + $0xc] sm:$0xf]
    %v54 = vld [vmem:[%s2 + $0x10] sm:$0xf]
    %v55 = vld [vmem:[%s2 + $0x14] sm:$0xf]
    %v56 = vld [vmem:[%s2 + $0x18] sm:$0xf]
    %v57 = vld [vmem:[%s2 + $0x1c] sm:$0xf]
    %v58 = vld [vmem:[%s2 + $0x20] sm:$0xf]
    %v59 = vld [vmem:[%s2 + $0x24] sm:$0xf]
    %v60 = vld [vmem:[%s2 + $0x28] sm:$0xf]
    %v61 = vld [vmem:[%s2 + $0x2c] sm:$0xf]
    %v62 = vld [vmem:[%s2 + $0x30] sm:$0xf]
    %v63 = vld [vmem:[%s2 + $0x34] sm:$0xf]
    %v64 = vld [vmem:[%s2 + $0x38] sm:$0xf]
    %v65 = vld [vmem:[%s2 + $0x3c] sm:$0xf]
    %v66 = vld [vmem:[%s2 + $0x40] sm:$0xf]
    %v67 = vld [vmem:[%s2 + $0x44] sm:$0xf]
    %v68 = vld [vmem:[%s2 + $0x48] sm:$0xf]
    %v69 = vld [vmem:[%s2 + $0x4c] sm:$0x1]
    %v70 = vld [vmem:[%s3] sm:$0x1]
    %v72 = vperm.slane %v70, 0
    %v94 = vunpack.c.l.b16 %v50
    %v95 = vunpack.c.l.b16 %v51
    %v96 = vunpack.c.l.b16 %v52
    %v97 = vunpack.c.l.b16 %v53
    %v98 = vunpack.c.l.b16 %v54
    %v99 = vunpack.c.l.b16 %v55
    %v100 = vunpack.c.l.b16 %v56
    %v101 = vunpack.c.l.b16 %v57
    %v102 = vunpack.c.l.b16 %v58
    %v103 = vunpack.c.l.b16 %v59
    %v104 = vunpack.c.l.b16 %v60
    %v105 = vunpack.c.l.b16 %v61
    %v106 = vunpack.c.l.b16 %v62
    %v107 = vunpack.c.l.b16 %v63
    %v108 = vunpack.c.l.b16 %v64
    %v109 = vunpack.c.l.b16 %v65
    %v110 = vunpack.c.l.b16 %v66
    %v111 = vunpack.c.l.b16 %v67
    %v112 = vunpack.c.l.b16 %v68
    %v113 = vunpack.c.l.b16 %v69
    %v114 = vpack.c.b16 %v95, %v94
    %v115 = vpack.c.b16 %v97, %v96
    %v116 = vpack.c.b16 %v99, %v98
    %v117 = vpack.c.b16 %v101, %v100
    %v118 = vpack.c.b16 %v103, %v102
    %v119 = vpack.c.b16 %v105, %v104
    %v120 = vpack.c.b16 %v107, %v106
    %v121 = vpack.c.b16 %v109, %v108
    %v122 = vpack.c.b16 %v111, %v110
    %v123 = vpack.c.b16 %v113, %v112
    %vm133 = vcmask 203776
    %v135 = vsel %vm133, %v49, 0
    %vm137 = vcmask 1043456
    %vm138 = vcmask 1044480
    %v139 = vsel %vm137, 4294967295, 65535
    %v140 = vsel %vm138, %v139, 0
    %v142 = vand.u32 %v123, %v140
    %144 = vmatpush.bf16.msra.mxu0 %v121
    %145 = vmatpush.bf16.msra.mxu0 %v120
    %146 = vmatpush.bf16.msra.mxu0 %v119
    %147 = vmatpush.bf16.msra.mxu0 %v118
    %148 = vmatpush.bf16.msra.mxu0 %v117
    %149 = vmatpush.bf16.msra.mxu0 %v116
    %150 = vmatpush.bf16.msra.mxu0 %v115
    %151 = vmatpush.bf16.msra.mxu0 %v114
    %152 = vmatmul.bf16.gmra.mxu0 %v48
    %v153 = vpop.f32.mrf.mxu0
    %v154 = vadd.f32 %v72, %v153
    %v155 = vpop.f32.mrf.mxu0
    %156 = vdwg.mxu0
    %157 = vmatpush.bf16.msra.mxu0 0
    %158 = vmatpush.bf16.msra.mxu0 0
    %159 = vmatpush.bf16.msra.mxu0 0
    %160 = vmatpush.bf16.msra.mxu0 0
    %161 = vmatpush.bf16.msra.mxu0 0
    %162 = vmatpush.bf16.msra.mxu0 0
    %163 = vmatpush.bf16.msra.mxu0 %v142
    %164 = vmatpush.bf16.msra.mxu0 %v122
    %165 = vmatmul.bf16.gmra.mxu0 %v135
    %v166 = vpop.f32.mrf.mxu0
    %v167 = vadd.f32 %v154, %v166
    %v168 = vpop.f32.mrf.mxu0
    %169 = vdwg.mxu0
    %v170 = vmax.f32 %v167, 0.0
    %v171 = vpack.c.bf16 %v170, %v170
    %v172 = vld [vmem:[%s4] sm:$0xf]
    %v173 = vld [vmem:[%s4 + $0x4] sm:$0xf]
    %v174 = vld [vmem:[%s4 + $0x8] sm:$0xf]
    %v175 = vld [vmem:[%s4 + $0xc] sm:$0xf]
    %v176 = vld [vmem:[%s4 + $0x10] sm:$0xf]
    %v177 = vld [vmem:[%s4 + $0x14] sm:$0xf]
    %v178 = vld [vmem:[%s4 + $0x18] sm:$0xf]
    %v179 = vld [vmem:[%s4 + $0x1c] sm:$0xf]
    %v180 = vld [vmem:[%s5] sm:$0x1]
    %v182 = vperm.slane %v180, 0
    %v192 = vunpack.c.l.b16 %v172
    %v193 = vunpack.c.l.b16 %v173
    %v194 = vunpack.c.l.b16 %v174
    %v195 = vunpack.c.l.b16 %v175
    %v196 = vunpack.c.l.b16 %v176
    %v197 = vunpack.c.l.b16 %v177
    %v198 = vunpack.c.l.b16 %v178
    %v199 = vunpack.c.l.b16 %v179
    %v200 = vpack.c.b16 %v193, %v192
    %v201 = vpack.c.b16 %v195, %v194
    %v202 = vpack.c.b16 %v197, %v196
    %v203 = vpack.c.b16 %v199, %v198
    %vm208 = vcmask 523264
    %v210 = vsel %vm208, %v171, 0
    %212 = vmatpush.bf16.msra.mxu0 0
    %213 = vmatpush.bf16.msra.mxu0 0
    %214 = vmatpush.bf16.msra.mxu0 0
    %215 = vmatpush.bf16.msra.mxu0 0
    %216 = vmatpush.bf16.msra.mxu0 %v203
    %217 = vmatpush.bf16.msra.mxu0 %v202
    %218 = vmatpush.bf16.msra.mxu0 %v201
    %219 = vmatpush.bf16.msra.mxu0 %v200
    %220 = vmatmul.bf16.gmra.mxu0 %v210
    %v221 = vpop.f32.mrf.mxu0
    %v222 = vadd.f32 %v182, %v221
    %v223 = vpop.f32.mrf.mxu0
    %224 = vdwg.mxu0
    %v225 = vmax.f32 %v222, 0.0
    %v226 = vld [vmem:[%s1] sm:$0xf]
    %228 = vst [vmem:[#allocation1] ss:$4 sm:$0xff] %v226
    %v229 = vld.sshfl [vmem:[#allocation1] sm:$0xff pattern:$0x73625140]
    %v230 = vld.sshfl [vmem:[#allocation1 + $0x8] sm:$0xff pattern:$0x73625140]
    %231 = vrot.lane.b32.xlu0 %v229, 16
    %v232 = vpop.permute.xlu0 %231
    %233 = vrot.lane.b32.xlu0 %v230, 16
    %v234 = vpop.permute.xlu0 %233
    %vm235 = vcmask 130048
    %v236 = vsel %vm235, %v232, %v234
    %v239 = vsel %vm235, %v225, %v232
    %v241 = vrot.slane %v236, 6
    %vm242 = vcmask 1041408
    %v243 = vsel %vm242, %v239, %v241
    %vm245 = vcmask 650242
    %vm246 = vmor %vm245, %vm242
    %247 = vst.msk [vmem:[#allocation3] sm:$0xf] %vm246, %v243
    %v248 = vpack.c.bf16 %v239, %v239
    %v249 = vpack.c.bf16 %v236, %v236
    %v250 = vld [vmem:[%s6] sm:$0xff]
    %v251 = vld [vmem:[%s6 + $0x8] sm:$0xff]
    %v252 = vld [vmem:[%s6 + $0x10] sm:$0xff]
    %v253 = vld [vmem:[%s6 + $0x18] sm:$0xff]
    %v254 = vld [vmem:[%s6 + $0x20] sm:$0xff]
    %v255 = vld [vmem:[%s6 + $0x28] sm:$0xff]
    %v256 = vld [vmem:[%s6 + $0x30] sm:$0xff]
    %v257 = vld [vmem:[%s6 + $0x38] sm:$0xff]
    %v258 = vld [vmem:[%s6 + $0x40] sm:$0xff]
    %v259 = vld [vmem:[%s6 + $0x48] sm:$0xff]
    %v260 = vld [vmem:[%s6 + $0x50] sm:$0xff]
    %v261 = vld [vmem:[%s6 + $0x58] sm:$0xff]
    %v262 = vld [vmem:[%s6 + $0x60] sm:$0xff]
    %v263 = vld [vmem:[%s6 + $0x68] sm:$0xff]
    %v264 = vld [vmem:[%s6 + $0x70] sm:$0xff]
    %v265 = vld [vmem:[%s6 + $0x78] sm:$0xff]
    %v266 = vld [vmem:[%s6 + $0x80] sm:$0xff]
    %v267 = vld [vmem:[%s6 + $0x88] sm:$0xff]
    %v268 = vld [vmem:[%s6 + $0x90] sm:$0xff]
    %v269 = vld [vmem:[%s6 + $0x98] sm:$0xff]
    %v270 = vld [vmem:[%s6 + $0xa0] sm:$0xff]
    %v271 = vld [vmem:[%s6 + $0xa8] sm:$0xff]
    %v272 = vld [vmem:[%s6 + $0xb0] sm:$0xff]
    %v273 = vld [vmem:[%s6 + $0xb8] sm:$0xff]
    %v274 = vld [vmem:[%s6 + $0xc0] sm:$0xff]
    %v275 = vld [vmem:[%s6 + $0xc8] sm:$0xff]
    %v276 = vld [vmem:[%s7] sm:$0x3]
    %v278 = vperm.slane %v276, 0
    %v279 = vperm.slane %v276, 1
    %v308 = vunpack.c.l.b16 %v250
    %v309 = vunpack.c.h.b16 %v250
    %v310 = vunpack.c.l.b16 %v251
    %v311 = vunpack.c.h.b16 %v251
    %v312 = vunpack.c.l.b16 %v252
    %v313 = vunpack.c.h.b16 %v252
    %v314 = vunpack.c.l.b16 %v253
    %v315 = vunpack.c.h.b16 %v253
    %v316 = vunpack.c.l.b16 %v254
    %v317 = vunpack.c.h.b16 %v254
    %v318 = vunpack.c.l.b16 %v255
    %v319 = vunpack.c.h.b16 %v255
    %v320 = vunpack.c.l.b16 %v256
    %v321 = vunpack.c.h.b16 %v256
    %v322 = vunpack.c.l.b16 %v257
    %v323 = vunpack.c.h.b16 %v257
    %v324 = vunpack.c.l.b16 %v258
    %v325 = vunpack.c.h.b16 %v258
    %v326 = vunpack.c.l.b16 %v259
    %v327 = vunpack.c.h.b16 %v259
    %v328 = vunpack.c.l.b16 %v260
    %v329 = vunpack.c.h.b16 %v260
    %v330 = vunpack.c.l.b16 %v261
    %v331 = vunpack.c.h.b16 %v261
    %v332 = vunpack.c.l.b16 %v262
    %v333 = vunpack.c.h.b16 %v262
    %v334 = vunpack.c.l.b16 %v263
    %v335 = vunpack.c.h.b16 %v263
    %v336 = vunpack.c.l.b16 %v264
    %v337 = vunpack.c.h.b16 %v264
    %v338 = vunpack.c.l.b16 %v265
    %v339 = vunpack.c.h.b16 %v265
    %v340 = vunpack.c.l.b16 %v266
    %v341 = vunpack.c.h.b16 %v266
    %v342 = vunpack.c.l.b16 %v267
    %v343 = vunpack.c.h.b16 %v267
    %v344 = vunpack.c.l.b16 %v268
    %v345 = vunpack.c.h.b16 %v268
    %v346 = vunpack.c.l.b16 %v269
    %v347 = vunpack.c.h.b16 %v269
    %v348 = vunpack.c.l.b16 %v270
    %v349 = vunpack.c.h.b16 %v270
    %v350 = vunpack.c.l.b16 %v271
    %v351 = vunpack.c.h.b16 %v271
    %v352 = vunpack.c.l.b16 %v272
    %v353 = vunpack.c.h.b16 %v272
    %v354 = vunpack.c.l.b16 %v273
    %v355 = vunpack.c.h.b16 %v273
    %v356 = vunpack.c.l.b16 %v274
    %v357 = vunpack.c.h.b16 %v274
    %v358 = vunpack.c.l.b16 %v275
    %v359 = vunpack.c.h.b16 %v275
    %v360 = vpack.c.b16 %v310, %v308
    %v361 = vpack.c.b16 %v311, %v309
    %v362 = vpack.c.b16 %v314, %v312
    %v363 = vpack.c.b16 %v315, %v313
    %v364 = vpack.c.b16 %v318, %v316
    %v365 = vpack.c.b16 %v319, %v317
    %v366 = vpack.c.b16 %v322, %v320
    %v367 = vpack.c.b16 %v323, %v321
    %v368 = vpack.c.b16 %v326, %v324
    %v369 = vpack.c.b16 %v327, %v325
    %v370 = vpack.c.b16 %v330, %v328
    %v371 = vpack.c.b16 %v331, %v329
    %v372 = vpack.c.b16 %v334, %v332
    %v373 = vpack.c.b16 %v335, %v333
    %v374 = vpack.c.b16 %v338, %v336
    %v375 = vpack.c.b16 %v339, %v337
    %v376 = vpack.c.b16 %v342, %v340
    %v377 = vpack.c.b16 %v343, %v341
    %v378 = vpack.c.b16 %v346, %v344
    %v379 = vpack.c.b16 %v347, %v345
    %v380 = vpack.c.b16 %v350, %v348
    %v381 = vpack.c.b16 %v351, %v349
    %v382 = vpack.c.b16 %v354, %v352
    %v383 = vpack.c.b16 %v355, %v353
    %v384 = vpack.c.b16 %v358, %v356
    %v385 = vpack.c.b16 %v359, %v357
    %vm412 = vcmask 654336
    %v414 = vsel %vm412, %v249, 0
    %416 = vmatpush.bf16.msra.mxu0 %v374
    %417 = vmatpush.bf16.msra.mxu0 %v372
    %418 = vmatpush.bf16.msra.mxu0 %v370
    %419 = vmatpush.bf16.msra.mxu0 %v368
    %420 = vmatpush.bf16.msra.mxu0 %v366
    %421 = vmatpush.bf16.msra.mxu0 %v364
    %422 = vmatpush.bf16.msra.mxu0 %v362
    %423 = vmatpush.bf16.msra.mxu0 %v360
    %424 = vmatmul.bf16.gmra.mxu0 %v248
    %v425 = vpop.f32.mrf.mxu0
    %v426 = vadd.f32 %v278, %v425
    %v427 = vpop.f32.mrf.mxu0
    %428 = vdwg.mxu0
    %429 = vmatpush.bf16.msra.mxu0 0
    %430 = vmatpush.bf16.msra.mxu0 0
    %431 = vmatpush.bf16.msra.mxu0 0
    %432 = vmatpush.bf16.msra.mxu0 %v384
    %433 = vmatpush.bf16.msra.mxu0 %v382
    %434 = vmatpush.bf16.msra.mxu0 %v380
    %435 = vmatpush.bf16.msra.mxu0 %v378
    %436 = vmatpush.bf16.msra.mxu0 %v376
    %437 = vmatmul.bf16.gmra.mxu0 %v414
    %v438 = vpop.f32.mrf.mxu0
    %v439 = vadd.f32 %v426, %v438
    %v440 = vpop.f32.mrf.mxu0
    %441 = vdwg.mxu0
    %442 = vmatpush.bf16.msra.mxu0 %v375
    %443 = vmatpush.bf16.msra.mxu0 %v373
    %444 = vmatpush.bf16.msra.mxu0 %v371
    %445 = vmatpush.bf16.msra.mxu0 %v369
    %446 = vmatpush.bf16.msra.mxu0 %v367
    %447 = vmatpush.bf16.msra.mxu0 %v365
    %448 = vmatpush.bf16.msra.mxu0 %v363
    %449 = vmatpush.bf16.msra.mxu0 %v361
    %450 = vmatmul.bf16.gmra.mxu0 %v248
    %v451 = vpop.f32.mrf.mxu0
    %v452 = vadd.f32 %v279, %v451
    %v453 = vpop.f32.mrf.mxu0
    %454 = vdwg.mxu0
    %455 = vmatpush.bf16.msra.mxu0 0
    %456 = vmatpush.bf16.msra.mxu0 0
    %457 = vmatpush.bf16.msra.mxu0 0
    %458 = vmatpush.bf16.msra.mxu0 %v385
    %459 = vmatpush.bf16.msra.mxu0 %v383
    %460 = vmatpush.bf16.msra.mxu0 %v381
    %461 = vmatpush.bf16.msra.mxu0 %v379
    %462 = vmatpush.bf16.msra.mxu0 %v377
    %463 = vmatmul.bf16.gmra.mxu0 %v414
    %v464 = vpop.f32.mrf.mxu0
    %v465 = vadd.f32 %v452, %v464
    %v466 = vpop.f32.mrf.mxu0
    %467 = vdwg.mxu0
    %v468 = vmax.f32 %v439, 0.0
    %v469 = vmax.f32 %v465, 0.0
    %v470 = vld [vmem:[%s8] sm:$0x3]
    %v472 = vperm.slane %v470, 0
    %v473 = vperm.slane %v470, 1
    %v476 = vmul.f32 %v468, %v472
    %v477 = vmul.f32 %v469, %v473
    %v478 = vsel %vm242, %v476, 0.0
    %vm479 = vcmask 648192
    %v480 = vsel %vm479, %v477, 0.0
    %v481 = vadd.f32 %v478, %v480
    %482 = vadd.xlane.f32.xlu0 %v481
    %v483 = vpop.xlane.xlu0 %482
    %v484 = vld [vmem:[#allocation2] sm:$0x1]
    %v486 = vperm.slane %v484, 0
    %v488 = vadd.f32 %v483, %v486
    %v489 = vxor.u32 %v488, 2147483648
    %v490 = vmul.f32 %v489, 1.442695
    %v491 = vpow.pop %v490
    %v492 = vadd.f32 %v491, 1.0
    %v493 = vrcp.pop %v492
    %v494 = vmul.f32 %v492, %v493
    %v495 = vsub.f32 1.0, %v494
    %v496 = vmul.f32 %v493, %v495
    %v497 = vadd.f32 %v493, %v496
    %vm498 = vweird.f32 %v492
    %vm499 = vweird.f32 %v493
    %vm500 = vmor %vm498, %vm499
    %v501 = vsel %vm500, %v493, %v497
    %v502 = vand.u32 2147483647, %v492
    %vm503 = vcmp.eq.f32.partialorder %v502, 8.507059e+37
    %v504 = vand.u32 %v492, 2147483648
    %v505 = vor.u32 1.1754944e-38, %v504
    %v506 = vsel %vm503, %v505, %v501
    %v507 = vmul.f32 1.0, %v506
    %vm508 = vcmask 1024
    %509 = vst.msk [vmem:[%s11] sm:$0x3] %vm508, %v507
    // Predicated region
    $region42: #{encoder_forward.7} parent=1 // pred_check
      _
    $region43: #{encoder_forward.7} parent=1 // pred_check_branch
      %511 = sbr.rel (0) target = $region45
    $region44: #{encoder_forward.7} parent=1 // pred_region
      %513 = vsyncadd [#allocation4], 0
      %s515 = sshll.u32 [#allocation3], 4
      %s516 = int_to_ptr.vmem [resolvable:$true] %s515
      %s517 = sshll.u32 %s10, 4
      %s518 = int_to_ptr.hbm [resolvable:$true] %s517
      %520 = dma.vmem_to_hbm [thread:$0]  %s516, 64, %s518, [#allocation4]
    $region45: #{encoder_forward.7} parent=1 // pred_fallthru
      _
    // Predicated region
    $region46: #{encoder_forward.7} parent=1 // pred_check
      _
    $region47: #{encoder_forward.7} parent=1 // pred_check_branch
      %522 = sbr.rel (0) target = $region49
    $region48: #{encoder_forward.7} parent=1 // pred_region
      _
    $region49: #{encoder_forward.7} parent=1 // pred_fallthru
      _
    // Predicated region
    $region50: #{encoder_forward.7} parent=1 // pred_check
      _
    $region51: #{encoder_forward.7} parent=1 // pred_check_branch
      %524 = sbr.rel (0) target = $region53
    $region52: #{encoder_forward.7} parent=1 // pred_region
      %526 = dma.done [#allocation4], 64
    $region53: #{encoder_forward.7} parent=1 // pred_fallthru
      _
    // Predicated region
    $region54: #{encoder_forward.7} parent=1 // pred_check
      _
    $region55: #{encoder_forward.7} parent=1 // pred_check_branch
      %528 = sbr.rel (0) target = $region57
    $region56: #{encoder_forward.7} parent=1 // pred_region
      _
    $region57: #{encoder_forward.7} parent=1 // pred_fallthru
      _
    %529 = vsyncpa [#allocation4], 1

</llo_original>
